<compile_context>
chip_gen: v6e
topology: v6e:2x2x1
jax: 0.10.0
libtpu: 0.0.40
codegen_flags: <defaults>
</compile_context>

<pallas_src>
import functools

import jax
import jax.numpy as jnp
import numpy as np
from jax.experimental import pallas as pl
from jax.experimental.pallas import tpu as pltpu


# ----------------------------------------------------------------------------
# Static architecture of the concrete encoder.
# ----------------------------------------------------------------------------
IN_C, IN_H, IN_W = 4, 16, 16
LAYERS = [
    dict(cout=8,  k=3, stride=2, pad=1),   # conv[0] + ReLU
    dict(cout=16, k=3, stride=2, pad=1),   # conv[1] + ReLU
]
LAST = dict(k=4, stride=1, pad=0)          # last_conv (no ReLU)

TB_MAX = 512                               # batch-tile rows (review: 512 reaches
                                           # ~85% of HBM roofline, fits v5e VMEM)


def _out_hw(h, w, k, s, p):
    return (h + 2 * p - k) // s + 1, (w + 2 * p - k) // s + 1


def _round_up(x, m):
    return ((x + m - 1) // m) * m


# ----------------------------------------------------------------------------
# Offline weight prep: exact Toeplitz expansion of a conv into a dense matrix.
# ----------------------------------------------------------------------------
def _conv_as_dense(weight, H, W, stride, pad):
    """weight: (Cout, Cin, kh, kw) numpy -> M: (Cin*H*W, Cout*Ho*Wo), NCHW
    flattening on both sides, so y_flat = x_flat @ M reproduces the conv."""
    Cout, Cin, kh, kw = weight.shape
    Ho, Wo = _out_hw(H, W, kh, stride, pad)
    M = np.zeros((Cin * H * W, Cout * Ho * Wo), np.float32)
    for co in range(Cout):
        for oh in range(Ho):
            for ow in range(Wo):
                o = (co * Ho + oh) * Wo + ow
                for ci in range(Cin):
                    for i in range(kh):
                        ih = oh * stride + i - pad
                        if ih < 0 or ih >= H:
                            continue
                        for j in range(kw):
                            iw = ow * stride + j - pad
                            if iw < 0 or iw >= W:
                                continue
                            M[(ci * H + ih) * W + iw, o] = weight[co, ci, i, j]
    return M, Ho, Wo


def init_params(nh, cin=IN_C, rng_seed=0):
    """PyTorch-layout conv weights (Cout, Cin, kh, kw) + biases."""
    key = jax.random.PRNGKey(rng_seed)
    ks = jax.random.split(key, 6)

    def winit(k, shape):
        fan_in = shape[1] * shape[2] * shape[3]
        return jax.random.normal(k, shape, jnp.float32) / np.sqrt(fan_in)

    return {
        "conv0_w": winit(ks[0], (LAYERS[0]["cout"], cin, 3, 3)),
        "conv0_b": 0.01 * jax.random.normal(ks[1], (LAYERS[0]["cout"],), jnp.float32),
        "conv1_w": winit(ks[2], (LAYERS[1]["cout"], LAYERS[0]["cout"], 3, 3)),
        "conv1_b": 0.01 * jax.random.normal(ks[3], (LAYERS[1]["cout"],), jnp.float32),
        "last_w": winit(ks[4], (nh, LAYERS[1]["cout"], 4, 4)),
        "last_b": 0.01 * jax.random.normal(ks[5], (nh,), jnp.float32),
    }


def prepare_params(params, nh):
    """Hoisted out of the forward path: build dense conv matrices (bf16),
    position-expanded biases (f32), pad the last output dim to 128 lanes."""
    m0, H0, W0 = _conv_as_dense(np.asarray(params["conv0_w"]), IN_H, IN_W,
                                LAYERS[0]["stride"], LAYERS[0]["pad"])
    b0 = np.repeat(np.asarray(params["conv0_b"]), H0 * W0)
    m1, H1, W1 = _conv_as_dense(np.asarray(params["conv1_w"]), H0, W0,
                                LAYERS[1]["stride"], LAYERS[1]["pad"])
    b1 = np.repeat(np.asarray(params["conv1_b"]), H1 * W1)
    m2, H2, W2 = _conv_as_dense(np.asarray(params["last_w"]), H1, W1,
                                LAST["stride"], LAST["pad"])
    assert (H2, W2) == (1, 1)
    b2 = np.asarray(params["last_b"])

    npad = max(128, _round_up(nh, 128))               # lane-dense final output
    m2p = np.zeros((m2.shape[0], npad), np.float32)
    m2p[:, :nh] = m2
    b2p = np.zeros((npad,), np.float32)
    b2p[:nh] = b2

    return {
        "m0": jnp.asarray(m0, jnp.bfloat16),
        "b0": jnp.asarray(b0, jnp.float32).reshape(1, -1),
        "m1": jnp.asarray(m1, jnp.bfloat16),
        "b1": jnp.asarray(b1, jnp.float32).reshape(1, -1),
        "m2": jnp.asarray(m2p, jnp.bfloat16),
        "b2": jnp.asarray(b2p, jnp.float32).reshape(1, -1),
    }


# ----------------------------------------------------------------------------
# Fused encoder kernel: conv0 -> ReLU -> conv1 -> ReLU -> last_conv,
# all three GEMMs on one batch tile, activations stay in VMEM/vregs.
# ----------------------------------------------------------------------------
def _encoder_kernel(x_ref, m0_ref, b0_ref, m1_ref, b1_ref, m2_ref, b2_ref,
                    out_ref, s0_ref, s1_ref):
    # In-kernel f32 -> bf16 cast of the input (saves the wrapper-side XLA cast
    # kernel and the extra HBM read of its bf16 result).
    x = x_ref[...].astype(jnp.bfloat16)

    h0 = jnp.dot(x, m0_ref[...], preferred_element_type=jnp.float32)
    h0 = jnp.maximum(h0 + b0_ref[...], 0.0)                   # f32 epilogue
    s0_ref[...] = h0.astype(s0_ref.dtype)                     # skip 0: bf16, 512 lanes

    h1 = jnp.dot(h0.astype(m1_ref.dtype), m1_ref[...],
                 preferred_element_type=jnp.float32)
    h1 = jnp.maximum(h1 + b1_ref[...], 0.0)
    s1_ref[...] = h1.astype(s1_ref.dtype)                     # skip 1: bf16, 256 lanes

    h2 = jnp.dot(h1.astype(m2_ref.dtype), m2_ref[...],
                 preferred_element_type=jnp.float32)
    out_ref[...] = (h2 + b2_ref[...]).astype(out_ref.dtype)   # (tb, 128) f32, lane-dense


def _fused_encoder_call(x_flat, p, tb, grid_b):
    Bp, K0 = x_flat.shape
    N0 = p["m0"].shape[1]
    N1 = p["m1"].shape[1]
    N2 = p["m2"].shape[1]

    flops = 2 * Bp * (K0 * N0 + N0 * N1 + N1 * N2)
    bytes_accessed = (
        Bp * (K0 * 4                # f32 input read
              + N2 * 4              # f32 encoder output write
              + N0 * 2 + N1 * 2)    # bf16 skip writes
        + 2 * (K0 * N0 + N0 * N1 + N1 * N2)   # bf16 weights (read once)
        + 4 * (N0 + N1 + N2)                  # f32 biases
    )

    row = lambda i: (i, 0)
    const = lambda i: (0, 0)

    return pl.pallas_call(
        _encoder_kernel,
        out_shape=(
            jax.ShapeDtypeStruct((Bp, N2), jnp.float32),    # encoder output (padded nh)
            jax.ShapeDtypeStruct((Bp, N0), jnp.bfloat16),   # skip of conv0 (bf16)
            jax.ShapeDtypeStruct((Bp, N1), jnp.bfloat16),   # skip of conv1 (bf16)
        ),
        grid=(grid_b,),
        in_specs=[
            pl.BlockSpec((tb, K0), row),          # f32 input tile; cast in-kernel
            pl.BlockSpec(p["m0"].shape, const),   # resident weights (constant index_map)
            pl.BlockSpec(p["b0"].shape, const),
            pl.BlockSpec(p["m1"].shape, const),
            pl.BlockSpec(p["b1"].shape, const),
            pl.BlockSpec(p["m2"].shape, const),
            pl.BlockSpec(p["b2"].shape, const),
        ],
        out_specs=(
            pl.BlockSpec((tb, N2), row),
            pl.BlockSpec((tb, N0), row),
            pl.BlockSpec((tb, N1), row),
        ),
        compiler_params=pltpu.CompilerParams(
            dimension_semantics=("parallel",),    # batch tiles -> both TCs on v7x
            vmem_limit_bytes=32 * 1024 * 1024,    # explicit; ~10 MiB live at TB=512
        ),
        cost_estimate=pl.CostEstimate(
            flops=flops, transcendentals=0, bytes_accessed=bytes_accessed),
    )(x_flat, p["m0"], p["b0"], p["m1"], p["b1"], p["m2"], p["b2"])


# ----------------------------------------------------------------------------
# Jitted forward (BaseEncoder.forward semantics).
# ----------------------------------------------------------------------------
@functools.partial(jax.jit, static_argnames=("nh", "return_skip"))
def base_encoder_forward(prepped, x, nh, return_skip=False):
    """x: (B, C, H, W) float32 NCHW. Returns (B, nh) f32 [and bf16 skips,
    deepest first].  Skips are emitted in bf16 (review: halves HBM writeback);
    upcast downstream if the consumer needs f32."""
    B = x.shape[0]
    H0, W0 = _out_hw(IN_H, IN_W, LAYERS[0]["k"], LAYERS[0]["stride"], LAYERS[0]["pad"])
    H1, W1 = _out_hw(H0, W0, LAYERS[1]["k"], LAYERS[1]["stride"], LAYERS[1]["pad"])

    x_flat = x.reshape(B, -1)                     # NCHW flatten; stays f32 (cast in-kernel)

    # Pad batch only to a sublane multiple (8); the ragged last block (if any)
    # is clipped/masked by Pallas — no rounding up to the tile size.
    Bp = max(8, _round_up(B, 8))
    if Bp != B:
        x_flat = jnp.pad(x_flat, ((0, Bp - B), (0, 0)))

    # Tile choice: ensure >= 2 grid steps when possible so the "parallel"
    # batch axis actually shards across v7x's two TensorCores.
    if Bp >= 16:
        tb = min(TB_MAX, _round_up((Bp + 1) // 2, 8))
    else:
        tb = Bp
    grid_b = pl.cdiv(Bp, tb)

    out_p, s0_p, s1_p = _fused_encoder_call(x_flat, prepped, tb, grid_b)

    out = out_p[:B, :nh]                          # .view(-1, nh)
    if return_skip:
        skip0 = s0_p[:B].reshape(B, LAYERS[0]["cout"], H0, W0)   # NCHW, no transpose
        skip1 = s1_p[:B].reshape(B, LAYERS[1]["cout"], H1, W1)
        return out, [skip1, skip0]                # skips[::-1] (deepest first)
    return out


# ----------------------------------------------------------------------------
# Pure-JAX reference (lax.conv) for correctness check.
# ----------------------------------------------------------------------------
def _conv_ref(x_nchw, weight, bias, *, stride, pad, relu):
    y = jax.lax.conv_general_dilated(
        x_nchw, weight,
        window_strides=(stride, stride),
        padding=[(pad, pad), (pad, pad)],
        dimension_numbers=("NCHW", "OIHW", "NCHW"),
    ) + bias.reshape(1, -1, 1, 1)
    return jnp.maximum(y, 0.0) if relu else y


def forward_ref(params, x, nh):
    h0 = _conv_ref(x, params["conv0_w"], params["conv0_b"], stride=2, pad=1, relu=True)
    h1 = _conv_ref(h0, params["conv1_w"], params["conv1_b"], stride=2, pad=1, relu=True)
    out = _conv_ref(h1, params["last_w"], params["last_b"], stride=1, pad=0, relu=False)
    return out.reshape(-1, nh), h0, h1


def _check(params, prepped, x, nh):
    B = x.shape[0]
    out, skips = base_encoder_forward(prepped, x, nh, return_skip=True)
    out = jax.block_until_ready(out)
    for s in skips:
        jax.block_until_ready(s)

    assert out.shape == (B, nh), out.shape
    assert skips[0].shape == (B, 16, 4, 4), skips[0].shape
    assert skips[1].shape == (B, 8, 8, 8), skips[1].shape

    ref_out, ref_h0, ref_h1 = forward_ref(params, x, nh)
    ref_out = jax.block_until_ready(ref_out)
    np.testing.assert_allclose(np.asarray(out), np.asarray(ref_out),
                               rtol=2e-2, atol=2e-2)
    np.testing.assert_allclose(np.asarray(skips[1].astype(jnp.float32)),
                               np.asarray(ref_h0), rtol=2e-2, atol=2e-2)
    np.testing.assert_allclose(np.asarray(skips[0].astype(jnp.float32)),
                               np.asarray(ref_h1), rtol=2e-2, atol=2e-2)


if __name__ == "__main__":
    nh = 32
    C, H, W = 4, 16, 16

    params = init_params(nh, cin=C, rng_seed=0)
    prepped = prepare_params(params, nh)

    key = jax.random.PRNGKey(0)
    k1, k2 = jax.random.split(key)

    # Small case: single grid step.
    x_small = jax.random.normal(k1, (2, C, H, W), jnp.float32)
    _check(params, prepped, x_small, nh)

    # Awkward batch: exercises >=2 grid steps + ragged (clipped) last block.
    x_big = jax.random.normal(k2, (20, C, H, W), jnp.float32)
    _check(params, prepped, x_big, nh)

    print("KERNEL_OK")
</pallas_src>

<mosaic_0001>
module attributes {stable_mosaic.version = 11 : i64} {
  func.func @_encoder_kernel(%arg0: i32, %arg1: memref<8x1024xf32, #tpu.memory_space<vmem>>, %arg2: memref<1024x512xbf16, #tpu.memory_space<vmem>>, %arg3: memref<1x512xf32, #tpu.memory_space<vmem>>, %arg4: memref<512x256xbf16, #tpu.memory_space<vmem>>, %arg5: memref<1x256xf32, #tpu.memory_space<vmem>>, %arg6: memref<256x128xbf16, #tpu.memory_space<vmem>>, %arg7: memref<1x128xf32, #tpu.memory_space<vmem>>, %arg8: memref<8x128xf32, #tpu.memory_space<vmem>>, %arg9: memref<8x512xbf16, #tpu.memory_space<vmem>>, %arg10: memref<8x256xbf16, #tpu.memory_space<vmem>>) attributes {dimension_semantics = [#tpu.dimension_semantics<parallel>], iteration_bounds = array<i64: 1>, scalar_prefetch = 0 : i64, scratch_operands = 0 : i64, tpu.core_type = #tpu.core_type<tc>, window_params = [{transform_indices = @transform_0, window_bounds = array<i64: 8, 1024>}, {pipeline_mode = #tpu.pipeline_mode<synchronous>, transform_indices = @transform_1, window_bounds = array<i64: 1024, 512>}, {pipeline_mode = #tpu.pipeline_mode<synchronous>, transform_indices = @transform_2, window_bounds = array<i64: 1, 512>}, {pipeline_mode = #tpu.pipeline_mode<synchronous>, transform_indices = @transform_3, window_bounds = array<i64: 512, 256>}, {pipeline_mode = #tpu.pipeline_mode<synchronous>, transform_indices = @transform_4, window_bounds = array<i64: 1, 256>}, {pipeline_mode = #tpu.pipeline_mode<synchronous>, transform_indices = @transform_5, window_bounds = array<i64: 256, 128>}, {pipeline_mode = #tpu.pipeline_mode<synchronous>, transform_indices = @transform_6, window_bounds = array<i64: 1, 128>}, {transform_indices = @transform_7, window_bounds = array<i64: 8, 128>}, {transform_indices = @transform_8, window_bounds = array<i64: 8, 512>}, {transform_indices = @transform_9, window_bounds = array<i64: 8, 256>}]} {
    %c0 = arith.constant 0 : index
    %c0_0 = arith.constant 0 : index
    %0 = vector.load %arg1[%c0, %c0_0] : memref<8x1024xf32, #tpu.memory_space<vmem>>, vector<8x1024xf32>
    %1 = arith.truncf %0 : vector<8x1024xf32> to vector<8x1024xbf16>
    %c0_1 = arith.constant 0 : index
    %c0_2 = arith.constant 0 : index
    %2 = vector.load %arg2[%c0_1, %c0_2] : memref<1024x512xbf16, #tpu.memory_space<vmem>>, vector<1024x512xbf16>
    %cst = arith.constant dense<0.000000e+00> : vector<8x512xf32>
    %3 = tpu.matmul %1, %2, %cst {dimension_numbers = #tpu.dot_dimension_numbers<[1], [0], [0], [1], [0, 0, 1, 1], [], []>} : vector<8x1024xbf16>, vector<1024x512xbf16>, vector<8x512xf32> -> vector<8x512xf32>
    %c0_3 = arith.constant 0 : index
    %c0_4 = arith.constant 0 : index
    %4 = vector.load %arg3[%c0_3, %c0_4] : memref<1x512xf32, #tpu.memory_space<vmem>>, vector<1x512xf32>
    %5 = vector.broadcast %4 : vector<1x512xf32> to vector<8x512xf32>
    %6 = arith.addf %3, %5 : vector<8x512xf32>
    %cst_5 = arith.constant 0.000000e+00 : f32
    %7 = vector.broadcast %cst_5 : f32 to vector<8x512xf32>
    %8 = arith.maximumf %6, %7 : vector<8x512xf32>
    %9 = arith.truncf %8 : vector<8x512xf32> to vector<8x512xbf16>
    %c0_6 = arith.constant 0 : index
    %c0_7 = arith.constant 0 : index
    %10 = vector.load %arg9[%c0_6, %c0_7] : memref<8x512xbf16, #tpu.memory_space<vmem>>, vector<8x512xbf16>
    tpu.vector_store %arg9[%c0_6, %c0_7], %9 {strides = array<i32>} : memref<8x512xbf16, #tpu.memory_space<vmem>>, vector<8x512xbf16>,
    %11 = arith.truncf %8 : vector<8x512xf32> to vector<8x512xbf16>
    %c0_8 = arith.constant 0 : index
    %c0_9 = arith.constant 0 : index
    %12 = vector.load %arg4[%c0_8, %c0_9] : memref<512x256xbf16, #tpu.memory_space<vmem>>, vector<512x256xbf16>
    %cst_10 = arith.constant dense<0.000000e+00> : vector<8x256xf32>
    %13 = tpu.matmul %11, %12, %cst_10 {dimension_numbers = #tpu.dot_dimension_numbers<[1], [0], [0], [1], [0, 0, 1, 1], [], []>} : vector<8x512xbf16>, vector<512x256xbf16>, vector<8x256xf32> -> vector<8x256xf32>
    %c0_11 = arith.constant 0 : index
    %c0_12 = arith.constant 0 : index
    %14 = vector.load %arg5[%c0_11, %c0_12] : memref<1x256xf32, #tpu.memory_space<vmem>>, vector<1x256xf32>
    %15 = vector.broadcast %14 : vector<1x256xf32> to vector<8x256xf32>
    %16 = arith.addf %13, %15 : vector<8x256xf32>
    %cst_13 = arith.constant 0.000000e+00 : f32
    %17 = vector.broadcast %cst_13 : f32 to vector<8x256xf32>
    %18 = arith.maximumf %16, %17 : vector<8x256xf32>
    %19 = arith.truncf %18 : vector<8x256xf32> to vector<8x256xbf16>
    %c0_14 = arith.constant 0 : index
    %c0_15 = arith.constant 0 : index
    %20 = vector.load %arg10[%c0_14, %c0_15] : memref<8x256xbf16, #tpu.memory_space<vmem>>, vector<8x256xbf16>
    tpu.vector_store %arg10[%c0_14, %c0_15], %19 {strides = array<i32>} : memref<8x256xbf16, #tpu.memory_space<vmem>>, vector<8x256xbf16>,
    %21 = arith.truncf %18 : vector<8x256xf32> to vector<8x256xbf16>
    %c0_16 = arith.constant 0 : index
    %c0_17 = arith.constant 0 : index
    %22 = vector.load %arg6[%c0_16, %c0_17] : memref<256x128xbf16, #tpu.memory_space<vmem>>, vector<256x128xbf16>
    %cst_18 = arith.constant dense<0.000000e+00> : vector<8x128xf32>
    %23 = tpu.matmul %21, %22, %cst_18 {dimension_numbers = #tpu.dot_dimension_numbers<[1], [0], [0], [1], [0, 0, 1, 1], [], []>} : vector<8x256xbf16>, vector<256x128xbf16>, vector<8x128xf32> -> vector<8x128xf32>
    %c0_19 = arith.constant 0 : index
    %c0_20 = arith.constant 0 : index
    %24 = vector.load %arg7[%c0_19, %c0_20] : memref<1x128xf32, #tpu.memory_space<vmem>>, vector<1x128xf32>
    %25 = vector.broadcast %24 : vector<1x128xf32> to vector<8x128xf32>
    %26 = arith.addf %23, %25 : vector<8x128xf32>
    %c0_21 = arith.constant 0 : index
    %c0_22 = arith.constant 0 : index
    %27 = vector.load %arg8[%c0_21, %c0_22] : memref<8x128xf32, #tpu.memory_space<vmem>>, vector<8x128xf32>
    tpu.vector_store %arg8[%c0_21, %c0_22], %26 {strides = array<i32>} : memref<8x128xf32, #tpu.memory_space<vmem>>, vector<8x128xf32>,
    return
  }
  func.func @transform_0(%arg0: i32) -> (i32, i32) {
    %c0_i32 = arith.constant 0 : i32
    %c0_i32_0 = arith.constant 0 : i32
    return %arg0, %c0_i32 : i32, i32
  }
  func.func @transform_1(%arg0: i32) -> (i32, i32) {
    %c0_i32 = arith.constant 0 : i32
    %c0_i32_0 = arith.constant 0 : i32
    %c0_i32_1 = arith.constant 0 : i32
    return %c0_i32, %c0_i32_0 : i32, i32
  }
  func.func @transform_2(%arg0: i32) -> (i32, i32) {
    %c0_i32 = arith.constant 0 : i32
    %c0_i32_0 = arith.constant 0 : i32
    %c0_i32_1 = arith.constant 0 : i32
    return %c0_i32, %c0_i32_0 : i32, i32
  }
  func.func @transform_3(%arg0: i32) -> (i32, i32) {
    %c0_i32 = arith.constant 0 : i32
    %c0_i32_0 = arith.constant 0 : i32
    %c0_i32_1 = arith.constant 0 : i32
    return %c0_i32, %c0_i32_0 : i32, i32
  }
  func.func @transform_4(%arg0: i32) -> (i32, i32) {
    %c0_i32 = arith.constant 0 : i32
    %c0_i32_0 = arith.constant 0 : i32
    %c0_i32_1 = arith.constant 0 : i32
    return %c0_i32, %c0_i32_0 : i32, i32
  }
  func.func @transform_5(%arg0: i32) -> (i32, i32) {
    %c0_i32 = arith.constant 0 : i32
    %c0_i32_0 = arith.constant 0 : i32
    %c0_i32_1 = arith.constant 0 : i32
    return %c0_i32, %c0_i32_0 : i32, i32
  }
  func.func @transform_6(%arg0: i32) -> (i32, i32) {
    %c0_i32 = arith.constant 0 : i32
    %c0_i32_0 = arith.constant 0 : i32
    %c0_i32_1 = arith.constant 0 : i32
    return %c0_i32, %c0_i32_0 : i32, i32
  }
  func.func @transform_7(%arg0: i32) -> (i32, i32) {
    %c0_i32 = arith.constant 0 : i32
    %c0_i32_0 = arith.constant 0 : i32
    return %arg0, %c0_i32 : i32, i32
  }
  func.func @transform_8(%arg0: i32) -> (i32, i32) {
    %c0_i32 = arith.constant 0 : i32
    %c0_i32_0 = arith.constant 0 : i32
    return %arg0, %c0_i32 : i32, i32
  }
  func.func @transform_9(%arg0: i32) -> (i32, i32) {
    %c0_i32 = arith.constant 0 : i32
    %c0_i32_0 = arith.constant 0 : i32
    return %arg0, %c0_i32 : i32, i32
  }
}

</mosaic_0001>

<llo_original>
// kernel: base_encoder_forward.1
$region0: #{base_encoder_forward.1}
  #allocation0 [shape = 'u32[]', space=smem, size = 0x4, offset = 0x4, fixed_abs, tag = 'smem constant byte address 0x4 - core index']
  #allocation1 [shape = 'u32[144,128]{1,0:T(1,128)}', space=vmem, size = 0x12000, scoped, tag = 'internal scratch']
  %s0 = inlined_call_operand.vmem [shape: f32[8,1024], index: 0, kind: input, shape index: {}]
  %s1 = inlined_call_operand.hbm [shape: bf16[1024,512], index: 1, kind: input, shape index: {}]
  %s2 = inlined_call_operand.vmem [shape: f32[1,512], index: 2, kind: input, shape index: {}]
  %s3 = inlined_call_operand.hbm [shape: bf16[512,256], index: 3, kind: input, shape index: {}]
  %s4 = inlined_call_operand.vmem [shape: f32[1,256], index: 4, kind: input, shape index: {}]
  %s5 = inlined_call_operand.vmem [shape: bf16[256,128], index: 5, kind: input, shape index: {}]
  %s6 = inlined_call_operand.vmem [shape: f32[1,128], index: 6, kind: input, shape index: {}]
  %s7 = inlined_call_operand.vmem [shape: f32[8,128], index: 7, kind: output, shape index: {0}]
  %s8 = inlined_call_operand.vmem [shape: bf16[8,512], index: 8, kind: output, shape index: {1}]
  %s9 = inlined_call_operand.vmem [shape: bf16[8,256], index: 9, kind: output, shape index: {2}]
  %10 = xla_tuple %s7, %s8, %s9
  %s11 = sld [smem:[#allocation0]]
  $region62: #{base_encoder_forward.1} parent=0
    _
  %s13 = ssub.s32 1, %s11
  %s14 = scalar_select 0, %s13, %s11
  $region1: #{base_encoder_forward.1} parent=0
    #allocation2 [shape = 'u8[1048576]{0}', space=vmem, size = 0x100000, scoped, tag = 'input window, operand 1, single buffered']
    #allocation3 [shape = 's32[1]{0}', space=sflag, size = 0x4, scoped, tag = 'scoped memory for base_encoder_forward.1']
    #allocation4 [shape = 'u8[262144]{0}', space=vmem, size = 0x40000, scoped, tag = 'input window, operand 3, single buffered']
    #allocation5 [shape = 's32[1]{0}', space=sflag, size = 0x4, scoped, tag = 'scoped memory for base_encoder_forward.1']
    %15 = vsyncpa [#allocation3], 0
    %16 = vsyncpa [#allocation5], 0
    // Predicated region
    $region2: #{base_encoder_forward.1} parent=1 // pred_check
      _
    $region3: #{base_encoder_forward.1} parent=1 // pred_check_branch
      %18 = sbr.rel (0) target = $region5
    $region4: #{base_encoder_forward.1} parent=1 // pred_region
      _
    $region5: #{base_encoder_forward.1} parent=1 // pred_fallthru
      _
    // Predicated region
    $region6: #{base_encoder_forward.1} parent=1 // pred_check
      _
    $region7: #{base_encoder_forward.1} parent=1 // pred_check_branch
      %20 = sbr.rel (0) target = $region9
    $region8: #{base_encoder_forward.1} parent=1 // pred_region
      %s22 = ssub.s32 32768, 32768
      %23 = vsyncadd [#allocation3], %s22
      %s24 = sshll.u32 [#allocation2], 4
      %s25 = int_to_ptr.vmem [resolvable:$true] %s24
      %30 = dma.hbm_to_vmem [thread:$0]  %s1, 32768, %s25, [#allocation3], 256, 256, 16
    $region9: #{base_encoder_forward.1} parent=1 // pred_fallthru
      _
    // Predicated region
    $region10: #{base_encoder_forward.1} parent=1 // pred_check
      _
    $region11: #{base_encoder_forward.1} parent=1 // pred_check_branch
      %32 = sbr.rel (0) target = $region13
    $region12: #{base_encoder_forward.1} parent=1 // pred_region
      _
    $region13: #{base_encoder_forward.1} parent=1 // pred_fallthru
      _
    // Predicated region
    $region14: #{base_encoder_forward.1} parent=1 // pred_check
      _
    $region15: #{base_encoder_forward.1} parent=1 // pred_check_branch
      %34 = sbr.rel (0) target = $region17
    $region16: #{base_encoder_forward.1} parent=1 // pred_region
      %s36 = ssub.s32 8192, 8192
      %37 = vsyncadd [#allocation5], %s36
      %s38 = sshll.u32 [#allocation4], 4
      %s39 = int_to_ptr.vmem [resolvable:$true] %s38
      %44 = dma.hbm_to_vmem [thread:$0]  %s3, 8192, %s39, [#allocation5], 128, 128, 8
    $region17: #{base_encoder_forward.1} parent=1 // pred_fallthru
      _
    // Predicated region
    $region18: #{base_encoder_forward.1} parent=1 // pred_check
      _
    $region19: #{base_encoder_forward.1} parent=1 // pred_check_branch
      %46 = sbr.rel (0) target = $region21
    $region20: #{base_encoder_forward.1} parent=1 // pred_region
      _
    $region21: #{base_encoder_forward.1} parent=1 // pred_fallthru
      _
    // Predicated region
    $region22: #{base_encoder_forward.1} parent=1 // pred_check
      _
    $region23: #{base_encoder_forward.1} parent=1 // pred_check_branch
      %48 = sbr.rel (0) target = $region25
    $region24: #{base_encoder_forward.1} parent=1 // pred_region
      _
    $region25: #{base_encoder_forward.1} parent=1 // pred_fallthru
      _
    // Predicated region
    $region26: #{base_encoder_forward.1} parent=1 // pred_check
      _
    $region27: #{base_encoder_forward.1} parent=1 // pred_check_branch
      %50 = sbr.rel (0) target = $region29
    $region28: #{base_encoder_forward.1} parent=1 // pred_region
      _
    $region29: #{base_encoder_forward.1} parent=1 // pred_fallthru
      _
    // Predicated region
    $region30: #{base_encoder_forward.1} parent=1 // pred_check
      _
    $region31: #{base_encoder_forward.1} parent=1 // pred_check_branch
      %52 = sbr.rel (0) target = $region33
    $region32: #{base_encoder_forward.1} parent=1 // pred_region
      %53 = dma.done [#allocation3], 32768
    $region33: #{base_encoder_forward.1} parent=1 // pred_fallthru
      _
    // Predicated region
    $region34: #{base_encoder_forward.1} parent=1 // pred_check
      _
    $region35: #{base_encoder_forward.1} parent=1 // pred_check_branch
      %55 = sbr.rel (0) target = $region37
    $region36: #{base_encoder_forward.1} parent=1 // pred_region
      %56 = dma.done [#allocation5], 8192
    $region37: #{base_encoder_forward.1} parent=1 // pred_fallthru
      _
    %v58 = vld [vmem:[%s0] sm:$0xff]
    %v59 = vld [vmem:[%s0 + $0x8] sm:$0xff]
    %v60 = vld [vmem:[%s0 + $0x10] sm:$0xff]
    %v61 = vld [vmem:[%s0 + $0x18] sm:$0xff]
    %v62 = vld [vmem:[%s0 + $0x20] sm:$0xff]
    %v63 = vld [vmem:[%s0 + $0x28] sm:$0xff]
    %v64 = vld [vmem:[%s0 + $0x30] sm:$0xff]
    %v65 = vld [vmem:[%s0 + $0x38] sm:$0xff]
    %v66 = vpack.c.bf16 %v58, %v58
    %v67 = vpack.c.bf16 %v59, %v59
    %v68 = vpack.c.bf16 %v60, %v60
    %v69 = vpack.c.bf16 %v61, %v61
    %v70 = vpack.c.bf16 %v62, %v62
    %v71 = vpack.c.bf16 %v63, %v63
    %v72 = vpack.c.bf16 %v64, %v64
    %v73 = vpack.c.bf16 %v65, %v65
    %v74 = vld [vmem:[#allocation2] sm:$0xff]
    %v75 = vld [vmem:[#allocation2 + $0x8] sm:$0xff]
    %v76 = vld [vmem:[#allocation2 + $0x10] sm:$0xff]
    %v77 = vld [vmem:[#allocation2 + $0x18] sm:$0xff]
    %v78 = vld [vmem:[#allocation2 + $0x20] sm:$0xff]
    %v79 = vld [vmem:[#allocation2 + $0x28] sm:$0xff]
    %v80 = vld [vmem:[#allocation2 + $0x30] sm:$0xff]
    %v81 = vld [vmem:[#allocation2 + $0x38] sm:$0xff]
    %v82 = vld [vmem:[#allocation2 + $0x40] sm:$0xff]
    %v83 = vld [vmem:[#allocation2 + $0x48] sm:$0xff]
    %v84 = vld [vmem:[#allocation2 + $0x50] sm:$0xff]
    %v85 = vld [vmem:[#allocation2 + $0x58] sm:$0xff]
    %v86 = vld [vmem:[#allocation2 + $0x60] sm:$0xff]
    %v87 = vld [vmem:[#allocation2 + $0x68] sm:$0xff]
    %v88 = vld [vmem:[#allocation2 + $0x70] sm:$0xff]
    %v89 = vld [vmem:[#allocation2 + $0x78] sm:$0xff]
    %v90 = vld [vmem:[#allocation2 + $0x80] sm:$0xff]
    %v91 = vld [vmem:[#allocation2 + $0x88] sm:$0xff]
    %v92 = vld [vmem:[#allocation2 + $0x90] sm:$0xff]
    %v93 = vld [vmem:[#allocation2 + $0x98] sm:$0xff]
    %v94 = vld [vmem:[#allocation2 + $0xa0] sm:$0xff]
    %v95 = vld [vmem:[#allocation2 + $0xa8] sm:$0xff]
    %v96 = vld [vmem:[#allocation2 + $0xb0] sm:$0xff]
    %v97 = vld [vmem:[#allocation2 + $0xb8] sm:$0xff]
    %v98 = vld [vmem:[#allocation2 + $0xc0] sm:$0xff]
    %v99 = vld [vmem:[#allocation2 + $0xc8] sm:$0xff]
    %v100 = vld [vmem:[#allocation2 + $0xd0] sm:$0xff]
    %v101 = vld [vmem:[#allocation2 + $0xd8] sm:$0xff]
    %v102 = vld [vmem:[#allocation2 + $0xe0] sm:$0xff]
    %v103 = vld [vmem:[#allocation2 + $0xe8] sm:$0xff]
    %v104 = vld [vmem:[#allocation2 + $0xf0] sm:$0xff]
    %v105 = vld [vmem:[#allocation2 + $0xf8] sm:$0xff]
    %v106 = vld [vmem:[#allocation2 + $0x100] sm:$0xff]
    %v107 = vld [vmem:[#allocation2 + $0x108] sm:$0xff]
    %v108 = vld [vmem:[#allocation2 + $0x110] sm:$0xff]
    %v109 = vld [vmem:[#allocation2 + $0x118] sm:$0xff]
    %v110 = vld [vmem:[#allocation2 + $0x120] sm:$0xff]
    %v111 = vld [vmem:[#allocation2 + $0x128] sm:$0xff]
    %v112 = vld [vmem:[#allocation2 + $0x130] sm:$0xff]
    %v113 = vld [vmem:[#allocation2 + $0x138] sm:$0xff]
    %v114 = vld [vmem:[#allocation2 + $0x140] sm:$0xff]
    %v115 = vld [vmem:[#allocation2 + $0x148] sm:$0xff]
    %v116 = vld [vmem:[#allocation2 + $0x150] sm:$0xff]
    %v117 = vld [vmem:[#allocation2 + $0x158] sm:$0xff]
    %v118 = vld [vmem:[#allocation2 + $0x160] sm:$0xff]
    %v119 = vld [vmem:[#allocation2 + $0x168] sm:$0xff]
    %v120 = vld [vmem:[#allocation2 + $0x170] sm:$0xff]
    %v121 = vld [vmem:[#allocation2 + $0x178] sm:$0xff]
    %v122 = vld [vmem:[#allocation2 + $0x180] sm:$0xff]
    %v123 = vld [vmem:[#allocation2 + $0x188] sm:$0xff]
    %v124 = vld [vmem:[#allocation2 + $0x190] sm:$0xff]
    %v125 = vld [vmem:[#allocation2 + $0x198] sm:$0xff]
    %v126 = vld [vmem:[#allocation2 + $0x1a0] sm:$0xff]
    %v127 = vld [vmem:[#allocation2 + $0x1a8] sm:$0xff]
    %v128 = vld [vmem:[#allocation2 + $0x1b0] sm:$0xff]
    %v129 = vld [vmem:[#allocation2 + $0x1b8] sm:$0xff]
    %v130 = vld [vmem:[#allocation2 + $0x1c0] sm:$0xff]
    %v131 = vld [vmem:[#allocation2 + $0x1c8] sm:$0xff]
    %v132 = vld [vmem:[#allocation2 + $0x1d0] sm:$0xff]
    %v133 = vld [vmem:[#allocation2 + $0x1d8] sm:$0xff]
    %v134 = vld [vmem:[#allocation2 + $0x1e0] sm:$0xff]
    %v135 = vld [vmem:[#allocation2 + $0x1e8] sm:$0xff]
    %v136 = vld [vmem:[#allocation2 + $0x1f0] sm:$0xff]
    %v137 = vld [vmem:[#allocation2 + $0x1f8] sm:$0xff]
    %v138 = vld [vmem:[#allocation2 + $0x200] sm:$0xff]
    %v139 = vld [vmem:[#allocation2 + $0x208] sm:$0xff]
    %v140 = vld [vmem:[#allocation2 + $0x210] sm:$0xff]
    %v141 = vld [vmem:[#allocation2 + $0x218] sm:$0xff]
    %v142 = vld [vmem:[#allocation2 + $0x220] sm:$0xff]
    %v143 = vld [vmem:[#allocation2 + $0x228] sm:$0xff]
    %v144 = vld [vmem:[#allocation2 + $0x230] sm:$0xff]
    %v145 = vld [vmem:[#allocation2 + $0x238] sm:$0xff]
    %v146 = vld [vmem:[#allocation2 + $0x240] sm:$0xff]
    %v147 = vld [vmem:[#allocation2 + $0x248] sm:$0xff]
    %v148 = vld [vmem:[#allocation2 + $0x250] sm:$0xff]
    %v149 = vld [vmem:[#allocation2 + $0x258] sm:$0xff]
    %v150 = vld [vmem:[#allocation2 + $0x260] sm:$0xff]
    %v151 = vld [vmem:[#allocation2 + $0x268] sm:$0xff]
    %v152 = vld [vmem:[#allocation2 + $0x270] sm:$0xff]
    %v153 = vld [vmem:[#allocation2 + $0x278] sm:$0xff]
    %v154 = vld [vmem:[#allocation2 + $0x280] sm:$0xff]
    %v155 = vld [vmem:[#allocation2 + $0x288] sm:$0xff]
    %v156 = vld [vmem:[#allocation2 + $0x290] sm:$0xff]
    %v157 = vld [vmem:[#allocation2 + $0x298] sm:$0xff]
    %v158 = vld [vmem:[#allocation2 + $0x2a0] sm:$0xff]
    %v159 = vld [vmem:[#allocation2 + $0x2a8] sm:$0xff]
    %v160 = vld [vmem:[#allocation2 + $0x2b0] sm:$0xff]
    %v161 = vld [vmem:[#allocation2 + $0x2b8] sm:$0xff]
    %v162 = vld [vmem:[#allocation2 + $0x2c0] sm:$0xff]
    %v163 = vld [vmem:[#allocation2 + $0x2c8] sm:$0xff]
    %v164 = vld [vmem:[#allocation2 + $0x2d0] sm:$0xff]
    %v165 = vld [vmem:[#allocation2 + $0x2d8] sm:$0xff]
    %v166 = vld [vmem:[#allocation2 + $0x2e0] sm:$0xff]
    %v167 = vld [vmem:[#allocation2 + $0x2e8] sm:$0xff]
    %v168 = vld [vmem:[#allocation2 + $0x2f0] sm:$0xff]
    %v169 = vld [vmem:[#allocation2 + $0x2f8] sm:$0xff]
    %v170 = vld [vmem:[#allocation2 + $0x300] sm:$0xff]
    %v171 = vld [vmem:[#allocation2 + $0x308] sm:$0xff]
    %v172 = vld [vmem:[#allocation2 + $0x310] sm:$0xff]
    %v173 = vld [vmem:[#allocation2 + $0x318] sm:$0xff]
    %v174 = vld [vmem:[#allocation2 + $0x320] sm:$0xff]
    %v175 = vld [vmem:[#allocation2 + $0x328] sm:$0xff]
    %v176 = vld [vmem:[#allocation2 + $0x330] sm:$0xff]
    %v177 = vld [vmem:[#allocation2 + $0x338] sm:$0xff]
    %v178 = vld [vmem:[#allocation2 + $0x340] sm:$0xff]
    %v179 = vld [vmem:[#allocation2 + $0x348] sm:$0xff]
    %v180 = vld [vmem:[#allocation2 + $0x350] sm:$0xff]
    %v181 = vld [vmem:[#allocation2 + $0x358] sm:$0xff]
    %v182 = vld [vmem:[#allocation2 + $0x360] sm:$0xff]
    %v183 = vld [vmem:[#allocation2 + $0x368] sm:$0xff]
    %v184 = vld [vmem:[#allocation2 + $0x370] sm:$0xff]
    %v185 = vld [vmem:[#allocation2 + $0x378] sm:$0xff]
    %v186 = vld [vmem:[#allocation2 + $0x380] sm:$0xff]
    %v187 = vld [vmem:[#allocation2 + $0x388] sm:$0xff]
    %v188 = vld [vmem:[#allocation2 + $0x390] sm:$0xff]
    %v189 = vld [vmem:[#allocation2 + $0x398] sm:$0xff]
    %v190 = vld [vmem:[#allocation2 + $0x3a0] sm:$0xff]
    %v191 = vld [vmem:[#allocation2 + $0x3a8] sm:$0xff]
    %v192 = vld [vmem:[#allocation2 + $0x3b0] sm:$0xff]
    %v193 = vld [vmem:[#allocation2 + $0x3b8] sm:$0xff]
    %v194 = vld [vmem:[#allocation2 + $0x3c0] sm:$0xff]
    %v195 = vld [vmem:[#allocation2 + $0x3c8] sm:$0xff]
    %v196 = vld [vmem:[#allocation2 + $0x3d0] sm:$0xff]
    %v197 = vld [vmem:[#allocation2 + $0x3d8] sm:$0xff]
    %v198 = vld [vmem:[#allocation2 + $0x3e0] sm:$0xff]
    %v199 = vld [vmem:[#allocation2 + $0x3e8] sm:$0xff]
    %v200 = vld [vmem:[#allocation2 + $0x3f0] sm:$0xff]
    %v201 = vld [vmem:[#allocation2 + $0x3f8] sm:$0xff]
    %v202 = vld [vmem:[#allocation2 + $0x400] sm:$0xff]
    %v203 = vld [vmem:[#allocation2 + $0x408] sm:$0xff]
    %v204 = vld [vmem:[#allocation2 + $0x410] sm:$0xff]
    %v205 = vld [vmem:[#allocation2 + $0x418] sm:$0xff]
    %v206 = vld [vmem:[#allocation2 + $0x420] sm:$0xff]
    %v207 = vld [vmem:[#allocation2 + $0x428] sm:$0xff]
    %v208 = vld [vmem:[#allocation2 + $0x430] sm:$0xff]
    %v209 = vld [vmem:[#allocation2 + $0x438] sm:$0xff]
    %v210 = vld [vmem:[#allocation2 + $0x440] sm:$0xff]
    %v211 = vld [vmem:[#allocation2 + $0x448] sm:$0xff]
    %v212 = vld [vmem:[#allocation2 + $0x450] sm:$0xff]
    %v213 = vld [vmem:[#allocation2 + $0x458] sm:$0xff]
    %v214 = vld [vmem:[#allocation2 + $0x460] sm:$0xff]
    %v215 = vld [vmem:[#allocation2 + $0x468] sm:$0xff]
    %v216 = vld [vmem:[#allocation2 + $0x470] sm:$0xff]
    %v217 = vld [vmem:[#allocation2 + $0x478] sm:$0xff]
    %v218 = vld [vmem:[#allocation2 + $0x480] sm:$0xff]
    %v219 = vld [vmem:[#allocation2 + $0x488] sm:$0xff]
    %v220 = vld [vmem:[#allocation2 + $0x490] sm:$0xff]
    %v221 = vld [vmem:[#allocation2 + $0x498] sm:$0xff]
    %v222 = vld [vmem:[#allocation2 + $0x4a0] sm:$0xff]
    %v223 = vld [vmem:[#allocation2 + $0x4a8] sm:$0xff]
    %v224 = vld [vmem:[#allocation2 + $0x4b0] sm:$0xff]
    %v225 = vld [vmem:[#allocation2 + $0x4b8] sm:$0xff]
    %v226 = vld [vmem:[#allocation2 + $0x4c0] sm:$0xff]
    %v227 = vld [vmem:[#allocation2 + $0x4c8] sm:$0xff]
    %v228 = vld [vmem:[#allocation2 + $0x4d0] sm:$0xff]
    %v229 = vld [vmem:[#allocation2 + $0x4d8] sm:$0xff]
    %v230 = vld [vmem:[#allocation2 + $0x4e0] sm:$0xff]
    %v231 = vld [vmem:[#allocation2 + $0x4e8] sm:$0xff]
    %v232 = vld [vmem:[#allocation2 + $0x4f0] sm:$0xff]
    %v233 = vld [vmem:[#allocation2 + $0x4f8] sm:$0xff]
    %v234 = vld [vmem:[#allocation2 + $0x500] sm:$0xff]
    %v235 = vld [vmem:[#allocation2 + $0x508] sm:$0xff]
    %v236 = vld [vmem:[#allocation2 + $0x510] sm:$0xff]
    %v237 = vld [vmem:[#allocation2 + $0x518] sm:$0xff]
    %v238 = vld [vmem:[#allocation2 + $0x520] sm:$0xff]
    %v239 = vld [vmem:[#allocation2 + $0x528] sm:$0xff]
    %v240 = vld [vmem:[#allocation2 + $0x530] sm:$0xff]
    %v241 = vld [vmem:[#allocation2 + $0x538] sm:$0xff]
    %v242 = vld [vmem:[#allocation2 + $0x540] sm:$0xff]
    %v243 = vld [vmem:[#allocation2 + $0x548] sm:$0xff]
    %v244 = vld [vmem:[#allocation2 + $0x550] sm:$0xff]
    %v245 = vld [vmem:[#allocation2 + $0x558] sm:$0xff]
    %v246 = vld [vmem:[#allocation2 + $0x560] sm:$0xff]
    %v247 = vld [vmem:[#allocation2 + $0x568] sm:$0xff]
    %v248 = vld [vmem:[#allocation2 + $0x570] sm:$0xff]
    %v249 = vld [vmem:[#allocation2 + $0x578] sm:$0xff]
    %v250 = vld [vmem:[#allocation2 + $0x580] sm:$0xff]
    %v251 = vld [vmem:[#allocation2 + $0x588] sm:$0xff]
    %v252 = vld [vmem:[#allocation2 + $0x590] sm:$0xff]
    %v253 = vld [vmem:[#allocation2 + $0x598] sm:$0xff]
    %v254 = vld [vmem:[#allocation2 + $0x5a0] sm:$0xff]
    %v255 = vld [vmem:[#allocation2 + $0x5a8] sm:$0xff]
    %v256 = vld [vmem:[#allocation2 + $0x5b0] sm:$0xff]
    %v257 = vld [vmem:[#allocation2 + $0x5b8] sm:$0xff]
    %v258 = vld [vmem:[#allocation2 + $0x5c0] sm:$0xff]
    %v259 = vld [vmem:[#allocation2 + $0x5c8] sm:$0xff]
    %v260 = vld [vmem:[#allocation2 + $0x5d0] sm:$0xff]
    %v261 = vld [vmem:[#allocation2 + $0x5d8] sm:$0xff]
    %v262 = vld [vmem:[#allocation2 + $0x5e0] sm:$0xff]
    %v263 = vld [vmem:[#allocation2 + $0x5e8] sm:$0xff]
    %v264 = vld [vmem:[#allocation2 + $0x5f0] sm:$0xff]
    %v265 = vld [vmem:[#allocation2 + $0x5f8] sm:$0xff]
    %v266 = vld [vmem:[#allocation2 + $0x600] sm:$0xff]
    %v267 = vld [vmem:[#allocation2 + $0x608] sm:$0xff]
    %v268 = vld [vmem:[#allocation2 + $0x610] sm:$0xff]
    %v269 = vld [vmem:[#allocation2 + $0x618] sm:$0xff]
    %v270 = vld [vmem:[#allocation2 + $0x620] sm:$0xff]
    %v271 = vld [vmem:[#allocation2 + $0x628] sm:$0xff]
    %v272 = vld [vmem:[#allocation2 + $0x630] sm:$0xff]
    %v273 = vld [vmem:[#allocation2 + $0x638] sm:$0xff]
    %v274 = vld [vmem:[#allocation2 + $0x640] sm:$0xff]
    %v275 = vld [vmem:[#allocation2 + $0x648] sm:$0xff]
    %v276 = vld [vmem:[#allocation2 + $0x650] sm:$0xff]
    %v277 = vld [vmem:[#allocation2 + $0x658] sm:$0xff]
    %v278 = vld [vmem:[#allocation2 + $0x660] sm:$0xff]
    %v279 = vld [vmem:[#allocation2 + $0x668] sm:$0xff]
    %v280 = vld [vmem:[#allocation2 + $0x670] sm:$0xff]
    %v281 = vld [vmem:[#allocation2 + $0x678] sm:$0xff]
    %v282 = vld [vmem:[#allocation2 + $0x680] sm:$0xff]
    %v283 = vld [vmem:[#allocation2 + $0x688] sm:$0xff]
    %v284 = vld [vmem:[#allocation2 + $0x690] sm:$0xff]
    %v285 = vld [vmem:[#allocation2 + $0x698] sm:$0xff]
    %v286 = vld [vmem:[#allocation2 + $0x6a0] sm:$0xff]
    %v287 = vld [vmem:[#allocation2 + $0x6a8] sm:$0xff]
    %v288 = vld [vmem:[#allocation2 + $0x6b0] sm:$0xff]
    %v289 = vld [vmem:[#allocation2 + $0x6b8] sm:$0xff]
    %v290 = vld [vmem:[#allocation2 + $0x6c0] sm:$0xff]
    %v291 = vld [vmem:[#allocation2 + $0x6c8] sm:$0xff]
    %v292 = vld [vmem:[#allocation2 + $0x6d0] sm:$0xff]
    %v293 = vld [vmem:[#allocation2 + $0x6d8] sm:$0xff]
    %v294 = vld [vmem:[#allocation2 + $0x6e0] sm:$0xff]
    %v295 = vld [vmem:[#allocation2 + $0x6e8] sm:$0xff]
    %v296 = vld [vmem:[#allocation2 + $0x6f0] sm:$0xff]
    %v297 = vld [vmem:[#allocation2 + $0x6f8] sm:$0xff]
    %v298 = vld [vmem:[#allocation2 + $0x700] sm:$0xff]
    %v299 = vld [vmem:[#allocation2 + $0x708] sm:$0xff]
    %v300 = vld [vmem:[#allocation2 + $0x710] sm:$0xff]
    %v301 = vld [vmem:[#allocation2 + $0x718] sm:$0xff]
    %v302 = vld [vmem:[#allocation2 + $0x720] sm:$0xff]
    %v303 = vld [vmem:[#allocation2 + $0x728] sm:$0xff]
    %v304 = vld [vmem:[#allocation2 + $0x730] sm:$0xff]
    %v305 = vld [vmem:[#allocation2 + $0x738] sm:$0xff]
    %v306 = vld [vmem:[#allocation2 + $0x740] sm:$0xff]
    %v307 = vld [vmem:[#allocation2 + $0x748] sm:$0xff]
    %v308 = vld [vmem:[#allocation2 + $0x750] sm:$0xff]
    %v309 = vld [vmem:[#allocation2 + $0x758] sm:$0xff]
    %v310 = vld [vmem:[#allocation2 + $0x760] sm:$0xff]
    %v311 = vld [vmem:[#allocation2 + $0x768] sm:$0xff]
    %v312 = vld [vmem:[#allocation2 + $0x770] sm:$0xff]
    %v313 = vld [vmem:[#allocation2 + $0x778] sm:$0xff]
    %v314 = vld [vmem:[#allocation2 + $0x780] sm:$0xff]
    %v315 = vld [vmem:[#allocation2 + $0x788] sm:$0xff]
    %v316 = vld [vmem:[#allocation2 + $0x790] sm:$0xff]
    %v317 = vld [vmem:[#allocation2 + $0x798] sm:$0xff]
    %v318 = vld [vmem:[#allocation2 + $0x7a0] sm:$0xff]
    %v319 = vld [vmem:[#allocation2 + $0x7a8] sm:$0xff]
    %v320 = vld [vmem:[#allocation2 + $0x7b0] sm:$0xff]
    %v321 = vld [vmem:[#allocation2 + $0x7b8] sm:$0xff]
    %v322 = vld [vmem:[#allocation2 + $0x7c0] sm:$0xff]
    %v323 = vld [vmem:[#allocation2 + $0x7c8] sm:$0xff]
    %v324 = vld [vmem:[#allocation2 + $0x7d0] sm:$0xff]
    %v325 = vld [vmem:[#allocation2 + $0x7d8] sm:$0xff]
    %v326 = vld [vmem:[#allocation2 + $0x7e0] sm:$0xff]
    %v327 = vld [vmem:[#allocation2 + $0x7e8] sm:$0xff]
    %v328 = vld [vmem:[#allocation2 + $0x7f0] sm:$0xff]
    %v329 = vld [vmem:[#allocation2 + $0x7f8] sm:$0xff]
    %v330 = vld [vmem:[%s2] sm:$0xf]
    %v332 = vlaneseq
    %v333 = vshrl.u32 %v332, 7
    %v334 = vsub.s32 0, %v333
    %v335 = vrot.slane %v330, %v334
    %v336 = vlaneseq
    %v337 = vshrl.u32 %v336, 7
    %v338 = vsub.s32 1, %v337
    %v339 = vrot.slane %v330, %v338
    %v340 = vlaneseq
    %v341 = vshrl.u32 %v340, 7
    %v342 = vsub.s32 2, %v341
    %v343 = vrot.slane %v330, %v342
    %v344 = vlaneseq
    %v345 = vshrl.u32 %v344, 7
    %v346 = vsub.s32 3, %v345
    %v347 = vrot.slane %v330, %v346
    %v608 = vunpack.c.l.b16 %v74
    %v609 = vunpack.c.h.b16 %v74
    %v610 = vunpack.c.l.b16 %v75
    %v611 = vunpack.c.h.b16 %v75
    %v612 = vunpack.c.l.b16 %v76
    %v613 = vunpack.c.h.b16 %v76
    %v614 = vunpack.c.l.b16 %v77
    %v615 = vunpack.c.h.b16 %v77
    %v616 = vunpack.c.l.b16 %v78
    %v617 = vunpack.c.h.b16 %v78
    %v618 = vunpack.c.l.b16 %v79
    %v619 = vunpack.c.h.b16 %v79
    %v620 = vunpack.c.l.b16 %v80
    %v621 = vunpack.c.h.b16 %v80
    %v622 = vunpack.c.l.b16 %v81
    %v623 = vunpack.c.h.b16 %v81
    %v624 = vunpack.c.l.b16 %v82
    %v625 = vunpack.c.h.b16 %v82
    %v626 = vunpack.c.l.b16 %v83
    %v627 = vunpack.c.h.b16 %v83
    %v628 = vunpack.c.l.b16 %v84
    %v629 = vunpack.c.h.b16 %v84
    %v630 = vunpack.c.l.b16 %v85
    %v631 = vunpack.c.h.b16 %v85
    %v632 = vunpack.c.l.b16 %v86
    %v633 = vunpack.c.h.b16 %v86
    %v634 = vunpack.c.l.b16 %v87
    %v635 = vunpack.c.h.b16 %v87
    %v636 = vunpack.c.l.b16 %v88
    %v637 = vunpack.c.h.b16 %v88
    %v638 = vunpack.c.l.b16 %v89
    %v639 = vunpack.c.h.b16 %v89
    %v640 = vunpack.c.l.b16 %v90
    %v641 = vunpack.c.h.b16 %v90
    %v642 = vunpack.c.l.b16 %v91
    %v643 = vunpack.c.h.b16 %v91
    %v644 = vunpack.c.l.b16 %v92
    %v645 = vunpack.c.h.b16 %v92
    %v646 = vunpack.c.l.b16 %v93
    %v647 = vunpack.c.h.b16 %v93
    %v648 = vunpack.c.l.b16 %v94
    %v649 = vunpack.c.h.b16 %v94
    %v650 = vunpack.c.l.b16 %v95
    %v651 = vunpack.c.h.b16 %v95
    %v652 = vunpack.c.l.b16 %v96
    %v653 = vunpack.c.h.b16 %v96
    %v654 = vunpack.c.l.b16 %v97
    %v655 = vunpack.c.h.b16 %v97
    %v656 = vunpack.c.l.b16 %v98
    %v657 = vunpack.c.h.b16 %v98
    %v658 = vunpack.c.l.b16 %v99
    %v659 = vunpack.c.h.b16 %v99
    %v660 = vunpack.c.l.b16 %v100
    %v661 = vunpack.c.h.b16 %v100
    %v662 = vunpack.c.l.b16 %v101
    %v663 = vunpack.c.h.b16 %v101
    %v664 = vunpack.c.l.b16 %v102
    %v665 = vunpack.c.h.b16 %v102
    %v666 = vunpack.c.l.b16 %v103
    %v667 = vunpack.c.h.b16 %v103
    %v668 = vunpack.c.l.b16 %v104
    %v669 = vunpack.c.h.b16 %v104
    %v670 = vunpack.c.l.b16 %v105
    %v671 = vunpack.c.h.b16 %v105
    %v672 = vunpack.c.l.b16 %v106
    %v673 = vunpack.c.h.b16 %v106
    %v674 = vunpack.c.l.b16 %v107
    %v675 = vunpack.c.h.b16 %v107
    %v676 = vunpack.c.l.b16 %v108
    %v677 = vunpack.c.h.b16 %v108
    %v678 = vunpack.c.l.b16 %v109
    %v679 = vunpack.c.h.b16 %v109
    %v680 = vunpack.c.l.b16 %v110
    %v681 = vunpack.c.h.b16 %v110
    %v682 = vunpack.c.l.b16 %v111
    %v683 = vunpack.c.h.b16 %v111
    %v684 = vunpack.c.l.b16 %v112
    %v685 = vunpack.c.h.b16 %v112
    %v686 = vunpack.c.l.b16 %v113
    %v687 = vunpack.c.h.b16 %v113
    %v688 = vunpack.c.l.b16 %v114
    %v689 = vunpack.c.h.b16 %v114
    %v690 = vunpack.c.l.b16 %v115
    %v691 = vunpack.c.h.b16 %v115
    %v692 = vunpack.c.l.b16 %v116
    %v693 = vunpack.c.h.b16 %v116
    %v694 = vunpack.c.l.b16 %v117
    %v695 = vunpack.c.h.b16 %v117
    %v696 = vunpack.c.l.b16 %v118
    %v697 = vunpack.c.h.b16 %v118
    %v698 = vunpack.c.l.b16 %v119
    %v699 = vunpack.c.h.b16 %v119
    %v700 = vunpack.c.l.b16 %v120
    %v701 = vunpack.c.h.b16 %v120
    %v702 = vunpack.c.l.b16 %v121
    %v703 = vunpack.c.h.b16 %v121
    %v704 = vunpack.c.l.b16 %v122
    %v705 = vunpack.c.h.b16 %v122
    %v706 = vunpack.c.l.b16 %v123
    %v707 = vunpack.c.h.b16 %v123
    %v708 = vunpack.c.l.b16 %v124
    %v709 = vunpack.c.h.b16 %v124
    %v710 = vunpack.c.l.b16 %v125
    %v711 = vunpack.c.h.b16 %v125
    %v712 = vunpack.c.l.b16 %v126
    %v713 = vunpack.c.h.b16 %v126
    %v714 = vunpack.c.l.b16 %v127
    %v715 = vunpack.c.h.b16 %v127
    %v716 = vunpack.c.l.b16 %v128
    %v717 = vunpack.c.h.b16 %v128
    %v718 = vunpack.c.l.b16 %v129
    %v719 = vunpack.c.h.b16 %v129
    %v720 = vunpack.c.l.b16 %v130
    %v721 = vunpack.c.h.b16 %v130
    %v722 = vunpack.c.l.b16 %v131
    %v723 = vunpack.c.h.b16 %v131
    %v724 = vunpack.c.l.b16 %v132
    %v725 = vunpack.c.h.b16 %v132
    %v726 = vunpack.c.l.b16 %v133
    %v727 = vunpack.c.h.b16 %v133
    %v728 = vunpack.c.l.b16 %v134
    %v729 = vunpack.c.h.b16 %v134
    %v730 = vunpack.c.l.b16 %v135
    %v731 = vunpack.c.h.b16 %v135
    %v732 = vunpack.c.l.b16 %v136
    %v733 = vunpack.c.h.b16 %v136
    %v734 = vunpack.c.l.b16 %v137
    %v735 = vunpack.c.h.b16 %v137
    %v736 = vunpack.c.l.b16 %v138
    %v737 = vunpack.c.h.b16 %v138
    %v738 = vunpack.c.l.b16 %v139
    %v739 = vunpack.c.h.b16 %v139
    %v740 = vunpack.c.l.b16 %v140
    %v741 = vunpack.c.h.b16 %v140
    %v742 = vunpack.c.l.b16 %v141
    %v743 = vunpack.c.h.b16 %v141
    %v744 = vunpack.c.l.b16 %v142
    %v745 = vunpack.c.h.b16 %v142
    %v746 = vunpack.c.l.b16 %v143
    %v747 = vunpack.c.h.b16 %v143
    %v748 = vunpack.c.l.b16 %v144
    %v749 = vunpack.c.h.b16 %v144
    %v750 = vunpack.c.l.b16 %v145
    %v751 = vunpack.c.h.b16 %v145
    %v752 = vunpack.c.l.b16 %v146
    %v753 = vunpack.c.h.b16 %v146
    %v754 = vunpack.c.l.b16 %v147
    %v755 = vunpack.c.h.b16 %v147
    %v756 = vunpack.c.l.b16 %v148
    %v757 = vunpack.c.h.b16 %v148
    %v758 = vunpack.c.l.b16 %v149
    %v759 = vunpack.c.h.b16 %v149
    %v760 = vunpack.c.l.b16 %v150
    %v761 = vunpack.c.h.b16 %v150
    %v762 = vunpack.c.l.b16 %v151
    %v763 = vunpack.c.h.b16 %v151
    %v764 = vunpack.c.l.b16 %v152
    %v765 = vunpack.c.h.b16 %v152
    %v766 = vunpack.c.l.b16 %v153
    %v767 = vunpack.c.h.b16 %v153
    %v768 = vunpack.c.l.b16 %v154
    %v769 = vunpack.c.h.b16 %v154
    %v770 = vunpack.c.l.b16 %v155
    %v771 = vunpack.c.h.b16 %v155
    %v772 = vunpack.c.l.b16 %v156
    %v773 = vunpack.c.h.b16 %v156
    %v774 = vunpack.c.l.b16 %v157
    %v775 = vunpack.c.h.b16 %v157
    %v776 = vunpack.c.l.b16 %v158
    %v777 = vunpack.c.h.b16 %v158
    %v778 = vunpack.c.l.b16 %v159
    %v779 = vunpack.c.h.b16 %v159
    %v780 = vunpack.c.l.b16 %v160
    %v781 = vunpack.c.h.b16 %v160
    %v782 = vunpack.c.l.b16 %v161
    %v783 = vunpack.c.h.b16 %v161
    %v784 = vunpack.c.l.b16 %v162
    %v785 = vunpack.c.h.b16 %v162
    %v786 = vunpack.c.l.b16 %v163
    %v787 = vunpack.c.h.b16 %v163
    %v788 = vunpack.c.l.b16 %v164
    %v789 = vunpack.c.h.b16 %v164
    %v790 = vunpack.c.l.b16 %v165
    %v791 = vunpack.c.h.b16 %v165
    %v792 = vunpack.c.l.b16 %v166
    %v793 = vunpack.c.h.b16 %v166
    %v794 = vunpack.c.l.b16 %v167
    %v795 = vunpack.c.h.b16 %v167
    %v796 = vunpack.c.l.b16 %v168
    %v797 = vunpack.c.h.b16 %v168
    %v798 = vunpack.c.l.b16 %v169
    %v799 = vunpack.c.h.b16 %v169
    %v800 = vunpack.c.l.b16 %v170
    %v801 = vunpack.c.h.b16 %v170
    %v802 = vunpack.c.l.b16 %v171
    %v803 = vunpack.c.h.b16 %v171
    %v804 = vunpack.c.l.b16 %v172
    %v805 = vunpack.c.h.b16 %v172
    %v806 = vunpack.c.l.b16 %v173
    %v807 = vunpack.c.h.b16 %v173
    %v808 = vunpack.c.l.b16 %v174
    %v809 = vunpack.c.h.b16 %v174
    %v810 = vunpack.c.l.b16 %v175
    %v811 = vunpack.c.h.b16 %v175
    %v812 = vunpack.c.l.b16 %v176
    %v813 = vunpack.c.h.b16 %v176
    %v814 = vunpack.c.l.b16 %v177
    %v815 = vunpack.c.h.b16 %v177
    %v816 = vunpack.c.l.b16 %v178
    %v817 = vunpack.c.h.b16 %v178
    %v818 = vunpack.c.l.b16 %v179
    %v819 = vunpack.c.h.b16 %v179
    %v820 = vunpack.c.l.b16 %v180
    %v821 = vunpack.c.h.b16 %v180
    %v822 = vunpack.c.l.b16 %v181
    %v823 = vunpack.c.h.b16 %v181
    %v824 = vunpack.c.l.b16 %v182
    %v825 = vunpack.c.h.b16 %v182
    %v826 = vunpack.c.l.b16 %v183
    %v827 = vunpack.c.h.b16 %v183
    %v828 = vunpack.c.l.b16 %v184
    %v829 = vunpack.c.h.b16 %v184
    %v830 = vunpack.c.l.b16 %v185
    %v831 = vunpack.c.h.b16 %v185
    %v832 = vunpack.c.l.b16 %v186
    %v833 = vunpack.c.h.b16 %v186
    %v834 = vunpack.c.l.b16 %v187
    %v835 = vunpack.c.h.b16 %v187
    %v836 = vunpack.c.l.b16 %v188
    %v837 = vunpack.c.h.b16 %v188
    %v838 = vunpack.c.l.b16 %v189
    %v839 = vunpack.c.h.b16 %v189
    %v840 = vunpack.c.l.b16 %v190
    %v841 = vunpack.c.h.b16 %v190
    %v842 = vunpack.c.l.b16 %v191
    %v843 = vunpack.c.h.b16 %v191
    %v844 = vunpack.c.l.b16 %v192
    %v845 = vunpack.c.h.b16 %v192
    %v846 = vunpack.c.l.b16 %v193
    %v847 = vunpack.c.h.b16 %v193
    %v848 = vunpack.c.l.b16 %v194
    %v849 = vunpack.c.h.b16 %v194
    %v850 = vunpack.c.l.b16 %v195
    %v851 = vunpack.c.h.b16 %v195
    %v852 = vunpack.c.l.b16 %v196
    %v853 = vunpack.c.h.b16 %v196
    %v854 = vunpack.c.l.b16 %v197
    %v855 = vunpack.c.h.b16 %v197
    %v856 = vunpack.c.l.b16 %v198
    %v857 = vunpack.c.h.b16 %v198
    %v858 = vunpack.c.l.b16 %v199
    %v859 = vunpack.c.h.b16 %v199
    %v860 = vunpack.c.l.b16 %v200
    %v861 = vunpack.c.h.b16 %v200
    %v862 = vunpack.c.l.b16 %v201
    %v863 = vunpack.c.h.b16 %v201
    %v864 = vunpack.c.l.b16 %v202
    %v865 = vunpack.c.h.b16 %v202
    %v866 = vunpack.c.l.b16 %v203
    %v867 = vunpack.c.h.b16 %v203
    %v868 = vunpack.c.l.b16 %v204
    %v869 = vunpack.c.h.b16 %v204
    %v870 = vunpack.c.l.b16 %v205
    %v871 = vunpack.c.h.b16 %v205
    %v872 = vunpack.c.l.b16 %v206
    %v873 = vunpack.c.h.b16 %v206
    %v874 = vunpack.c.l.b16 %v207
    %v875 = vunpack.c.h.b16 %v207
    %v876 = vunpack.c.l.b16 %v208
    %v877 = vunpack.c.h.b16 %v208
    %v878 = vunpack.c.l.b16 %v209
    %v879 = vunpack.c.h.b16 %v209
    %v880 = vunpack.c.l.b16 %v210
    %v881 = vunpack.c.h.b16 %v210
    %v882 = vunpack.c.l.b16 %v211
    %v883 = vunpack.c.h.b16 %v211
    %v884 = vunpack.c.l.b16 %v212
    %v885 = vunpack.c.h.b16 %v212
    %v886 = vunpack.c.l.b16 %v213
    %v887 = vunpack.c.h.b16 %v213
    %v888 = vunpack.c.l.b16 %v214
    %v889 = vunpack.c.h.b16 %v214
    %v890 = vunpack.c.l.b16 %v215
    %v891 = vunpack.c.h.b16 %v215
    %v892 = vunpack.c.l.b16 %v216
    %v893 = vunpack.c.h.b16 %v216
    %v894 = vunpack.c.l.b16 %v217
    %v895 = vunpack.c.h.b16 %v217
    %v896 = vunpack.c.l.b16 %v218
    %v897 = vunpack.c.h.b16 %v218
    %v898 = vunpack.c.l.b16 %v219
    %v899 = vunpack.c.h.b16 %v219
    %v900 = vunpack.c.l.b16 %v220
    %v901 = vunpack.c.h.b16 %v220
    %v902 = vunpack.c.l.b16 %v221
    %v903 = vunpack.c.h.b16 %v221
    %v904 = vunpack.c.l.b16 %v222
    %v905 = vunpack.c.h.b16 %v222
    %v906 = vunpack.c.l.b16 %v223
    %v907 = vunpack.c.h.b16 %v223
    %v908 = vunpack.c.l.b16 %v224
    %v909 = vunpack.c.h.b16 %v224
    %v910 = vunpack.c.l.b16 %v225
    %v911 = vunpack.c.h.b16 %v225
    %v912 = vunpack.c.l.b16 %v226
    %v913 = vunpack.c.h.b16 %v226
    %v914 = vunpack.c.l.b16 %v227
    %v915 = vunpack.c.h.b16 %v227
    %v916 = vunpack.c.l.b16 %v228
    %v917 = vunpack.c.h.b16 %v228
    %v918 = vunpack.c.l.b16 %v229
    %v919 = vunpack.c.h.b16 %v229
    %v920 = vunpack.c.l.b16 %v230
    %v921 = vunpack.c.h.b16 %v230
    %v922 = vunpack.c.l.b16 %v231
    %v923 = vunpack.c.h.b16 %v231
    %v924 = vunpack.c.l.b16 %v232
    %v925 = vunpack.c.h.b16 %v232
    %v926 = vunpack.c.l.b16 %v233
    %v927 = vunpack.c.h.b16 %v233
    %v928 = vunpack.c.l.b16 %v234
    %v929 = vunpack.c.h.b16 %v234
    %v930 = vunpack.c.l.b16 %v235
    %v931 = vunpack.c.h.b16 %v235
    %v932 = vunpack.c.l.b16 %v236
    %v933 = vunpack.c.h.b16 %v236
    %v934 = vunpack.c.l.b16 %v237
    %v935 = vunpack.c.h.b16 %v237
    %v936 = vunpack.c.l.b16 %v238
    %v937 = vunpack.c.h.b16 %v238
    %v938 = vunpack.c.l.b16 %v239
    %v939 = vunpack.c.h.b16 %v239
    %v940 = vunpack.c.l.b16 %v240
    %v941 = vunpack.c.h.b16 %v240
    %v942 = vunpack.c.l.b16 %v241
    %v943 = vunpack.c.h.b16 %v241
    %v944 = vunpack.c.l.b16 %v242
    %v945 = vunpack.c.h.b16 %v242
    %v946 = vunpack.c.l.b16 %v243
    %v947 = vunpack.c.h.b16 %v243
    %v948 = vunpack.c.l.b16 %v244
    %v949 = vunpack.c.h.b16 %v244
    %v950 = vunpack.c.l.b16 %v245
    %v951 = vunpack.c.h.b16 %v245
    %v952 = vunpack.c.l.b16 %v246
    %v953 = vunpack.c.h.b16 %v246
    %v954 = vunpack.c.l.b16 %v247
    %v955 = vunpack.c.h.b16 %v247
    %v956 = vunpack.c.l.b16 %v248
    %v957 = vunpack.c.h.b16 %v248
    %v958 = vunpack.c.l.b16 %v249
    %v959 = vunpack.c.h.b16 %v249
    %v960 = vunpack.c.l.b16 %v250
    %v961 = vunpack.c.h.b16 %v250
    %v962 = vunpack.c.l.b16 %v251
    %v963 = vunpack.c.h.b16 %v251
    %v964 = vunpack.c.l.b16 %v252
    %v965 = vunpack.c.h.b16 %v252
    %v966 = vunpack.c.l.b16 %v253
    %v967 = vunpack.c.h.b16 %v253
    %v968 = vunpack.c.l.b16 %v254
    %v969 = vunpack.c.h.b16 %v254
    %v970 = vunpack.c.l.b16 %v255
    %v971 = vunpack.c.h.b16 %v255
    %v972 = vunpack.c.l.b16 %v256
    %v973 = vunpack.c.h.b16 %v256
    %v974 = vunpack.c.l.b16 %v257
    %v975 = vunpack.c.h.b16 %v257
    %v976 = vunpack.c.l.b16 %v258
    %v977 = vunpack.c.h.b16 %v258
    %v978 = vunpack.c.l.b16 %v259
    %v979 = vunpack.c.h.b16 %v259
    %v980 = vunpack.c.l.b16 %v260
    %v981 = vunpack.c.h.b16 %v260
    %v982 = vunpack.c.l.b16 %v261
    %v983 = vunpack.c.h.b16 %v261
    %v984 = vunpack.c.l.b16 %v262
    %v985 = vunpack.c.h.b16 %v262
    %v986 = vunpack.c.l.b16 %v263
    %v987 = vunpack.c.h.b16 %v263
    %v988 = vunpack.c.l.b16 %v264
    %v989 = vunpack.c.h.b16 %v264
    %v990 = vunpack.c.l.b16 %v265
    %v991 = vunpack.c.h.b16 %v265
    %v992 = vunpack.c.l.b16 %v266
    %v993 = vunpack.c.h.b16 %v266
    %v994 = vunpack.c.l.b16 %v267
    %v995 = vunpack.c.h.b16 %v267
    %v996 = vunpack.c.l.b16 %v268
    %v997 = vunpack.c.h.b16 %v268
    %v998 = vunpack.c.l.b16 %v269
    %v999 = vunpack.c.h.b16 %v269
    %v1000 = vunpack.c.l.b16 %v270
    %v1001 = vunpack.c.h.b16 %v270
    %v1002 = vunpack.c.l.b16 %v271
    %v1003 = vunpack.c.h.b16 %v271
    %v1004 = vunpack.c.l.b16 %v272
    %v1005 = vunpack.c.h.b16 %v272
    %v1006 = vunpack.c.l.b16 %v273
    %v1007 = vunpack.c.h.b16 %v273
    %v1008 = vunpack.c.l.b16 %v274
    %v1009 = vunpack.c.h.b16 %v274
    %v1010 = vunpack.c.l.b16 %v275
    %v1011 = vunpack.c.h.b16 %v275
    %v1012 = vunpack.c.l.b16 %v276
    %v1013 = vunpack.c.h.b16 %v276
    %v1014 = vunpack.c.l.b16 %v277
    %v1015 = vunpack.c.h.b16 %v277
    %v1016 = vunpack.c.l.b16 %v278
    %v1017 = vunpack.c.h.b16 %v278
    %v1018 = vunpack.c.l.b16 %v279
    %v1019 = vunpack.c.h.b16 %v279
    %v1020 = vunpack.c.l.b16 %v280
    %v1021 = vunpack.c.h.b16 %v280
    %v1022 = vunpack.c.l.b16 %v281
    %v1023 = vunpack.c.h.b16 %v281
    %v1024 = vunpack.c.l.b16 %v282
    %v1025 = vunpack.c.h.b16 %v282
    %v1026 = vunpack.c.l.b16 %v283
    %v1027 = vunpack.c.h.b16 %v283
    %v1028 = vunpack.c.l.b16 %v284
    %v1029 = vunpack.c.h.b16 %v284
    %v1030 = vunpack.c.l.b16 %v285
    %v1031 = vunpack.c.h.b16 %v285
    %v1032 = vunpack.c.l.b16 %v286
    %v1033 = vunpack.c.h.b16 %v286
    %v1034 = vunpack.c.l.b16 %v287
    %v1035 = vunpack.c.h.b16 %v287
    %v1036 = vunpack.c.l.b16 %v288
    %v1037 = vunpack.c.h.b16 %v288
    %v1038 = vunpack.c.l.b16 %v289
    %v1039 = vunpack.c.h.b16 %v289
    %v1040 = vunpack.c.l.b16 %v290
    %v1041 = vunpack.c.h.b16 %v290
    %v1042 = vunpack.c.l.b16 %v291
    %v1043 = vunpack.c.h.b16 %v291
    %v1044 = vunpack.c.l.b16 %v292
    %v1045 = vunpack.c.h.b16 %v292
    %v1046 = vunpack.c.l.b16 %v293
    %v1047 = vunpack.c.h.b16 %v293
    %v1048 = vunpack.c.l.b16 %v294
    %v1049 = vunpack.c.h.b16 %v294
    %v1050 = vunpack.c.l.b16 %v295
    %v1051 = vunpack.c.h.b16 %v295
    %v1052 = vunpack.c.l.b16 %v296
    %v1053 = vunpack.c.h.b16 %v296
    %v1054 = vunpack.c.l.b16 %v297
    %v1055 = vunpack.c.h.b16 %v297
    %v1056 = vunpack.c.l.b16 %v298
    %v1057 = vunpack.c.h.b16 %v298
    %v1058 = vunpack.c.l.b16 %v299
    %v1059 = vunpack.c.h.b16 %v299
    %v1060 = vunpack.c.l.b16 %v300
    %v1061 = vunpack.c.h.b16 %v300
    %v1062 = vunpack.c.l.b16 %v301
    %v1063 = vunpack.c.h.b16 %v301
    %v1064 = vunpack.c.l.b16 %v302
    %v1065 = vunpack.c.h.b16 %v302
    %v1066 = vunpack.c.l.b16 %v303
    %v1067 = vunpack.c.h.b16 %v303
    %v1068 = vunpack.c.l.b16 %v304
    %v1069 = vunpack.c.h.b16 %v304
    %v1070 = vunpack.c.l.b16 %v305
    %v1071 = vunpack.c.h.b16 %v305
    %v1072 = vunpack.c.l.b16 %v306
    %v1073 = vunpack.c.h.b16 %v306
    %v1074 = vunpack.c.l.b16 %v307
    %v1075 = vunpack.c.h.b16 %v307
    %v1076 = vunpack.c.l.b16 %v308
    %v1077 = vunpack.c.h.b16 %v308
    %v1078 = vunpack.c.l.b16 %v309
    %v1079 = vunpack.c.h.b16 %v309
    %v1080 = vunpack.c.l.b16 %v310
    %v1081 = vunpack.c.h.b16 %v310
    %v1082 = vunpack.c.l.b16 %v311
    %v1083 = vunpack.c.h.b16 %v311
    %v1084 = vunpack.c.l.b16 %v312
    %v1085 = vunpack.c.h.b16 %v312
    %v1086 = vunpack.c.l.b16 %v313
    %v1087 = vunpack.c.h.b16 %v313
    %v1088 = vunpack.c.l.b16 %v314
    %v1089 = vunpack.c.h.b16 %v314
    %v1090 = vunpack.c.l.b16 %v315
    %v1091 = vunpack.c.h.b16 %v315
    %v1092 = vunpack.c.l.b16 %v316
    %v1093 = vunpack.c.h.b16 %v316
    %v1094 = vunpack.c.l.b16 %v317
    %v1095 = vunpack.c.h.b16 %v317
    %v1096 = vunpack.c.l.b16 %v318
    %v1097 = vunpack.c.h.b16 %v318
    %v1098 = vunpack.c.l.b16 %v319
    %v1099 = vunpack.c.h.b16 %v319
    %v1100 = vunpack.c.l.b16 %v320
    %v1101 = vunpack.c.h.b16 %v320
    %v1102 = vunpack.c.l.b16 %v321
    %v1103 = vunpack.c.h.b16 %v321
    %v1104 = vunpack.c.l.b16 %v322
    %v1105 = vunpack.c.h.b16 %v322
    %v1106 = vunpack.c.l.b16 %v323
    %v1107 = vunpack.c.h.b16 %v323
    %v1108 = vunpack.c.l.b16 %v324
    %v1109 = vunpack.c.h.b16 %v324
    %v1110 = vunpack.c.l.b16 %v325
    %v1111 = vunpack.c.h.b16 %v325
    %v1112 = vunpack.c.l.b16 %v326
    %v1113 = vunpack.c.h.b16 %v326
    %v1114 = vunpack.c.l.b16 %v327
    %v1115 = vunpack.c.h.b16 %v327
    %v1116 = vunpack.c.l.b16 %v328
    %v1117 = vunpack.c.h.b16 %v328
    %v1118 = vunpack.c.l.b16 %v329
    %v1119 = vunpack.c.h.b16 %v329
    %v1120 = vpack.c.b16 %v612, %v608
    %v1121 = vpack.c.b16 %v613, %v609
    %v1122 = vpack.c.b16 %v614, %v610
    %v1123 = vpack.c.b16 %v615, %v611
    %v1124 = vpack.c.b16 %v620, %v616
    %v1125 = vpack.c.b16 %v621, %v617
    %v1126 = vpack.c.b16 %v622, %v618
    %v1127 = vpack.c.b16 %v623, %v619
    %v1128 = vpack.c.b16 %v628, %v624
    %v1129 = vpack.c.b16 %v629, %v625
    %v1130 = vpack.c.b16 %v630, %v626
    %v1131 = vpack.c.b16 %v631, %v627
    %v1132 = vpack.c.b16 %v636, %v632
    %v1133 = vpack.c.b16 %v637, %v633
    %v1134 = vpack.c.b16 %v638, %v634
    %v1135 = vpack.c.b16 %v639, %v635
    %v1136 = vpack.c.b16 %v644, %v640
    %v1137 = vpack.c.b16 %v645, %v641
    %v1138 = vpack.c.b16 %v646, %v642
    %v1139 = vpack.c.b16 %v647, %v643
    %v1140 = vpack.c.b16 %v652, %v648
    %v1141 = vpack.c.b16 %v653, %v649
    %v1142 = vpack.c.b16 %v654, %v650
    %v1143 = vpack.c.b16 %v655, %v651
    %v1144 = vpack.c.b16 %v660, %v656
    %v1145 = vpack.c.b16 %v661, %v657
    %v1146 = vpack.c.b16 %v662, %v658
    %v1147 = vpack.c.b16 %v663, %v659
    %v1148 = vpack.c.b16 %v668, %v664
    %v1149 = vpack.c.b16 %v669, %v665
    %v1150 = vpack.c.b16 %v670, %v666
    %v1151 = vpack.c.b16 %v671, %v667
    %v1152 = vpack.c.b16 %v676, %v672
    %v1153 = vpack.c.b16 %v677, %v673
    %v1154 = vpack.c.b16 %v678, %v674
    %v1155 = vpack.c.b16 %v679, %v675
    %v1156 = vpack.c.b16 %v684, %v680
    %v1157 = vpack.c.b16 %v685, %v681
    %v1158 = vpack.c.b16 %v686, %v682
    %v1159 = vpack.c.b16 %v687, %v683
    %v1160 = vpack.c.b16 %v692, %v688
    %v1161 = vpack.c.b16 %v693, %v689
    %v1162 = vpack.c.b16 %v694, %v690
    %v1163 = vpack.c.b16 %v695, %v691
    %v1164 = vpack.c.b16 %v700, %v696
    %v1165 = vpack.c.b16 %v701, %v697
    %v1166 = vpack.c.b16 %v702, %v698
    %v1167 = vpack.c.b16 %v703, %v699
    %v1168 = vpack.c.b16 %v708, %v704
    %v1169 = vpack.c.b16 %v709, %v705
    %v1170 = vpack.c.b16 %v710, %v706
    %v1171 = vpack.c.b16 %v711, %v707
    %v1172 = vpack.c.b16 %v716, %v712
    %v1173 = vpack.c.b16 %v717, %v713
    %v1174 = vpack.c.b16 %v718, %v714
    %v1175 = vpack.c.b16 %v719, %v715
    %v1176 = vpack.c.b16 %v724, %v720
    %v1177 = vpack.c.b16 %v725, %v721
    %v1178 = vpack.c.b16 %v726, %v722
    %v1179 = vpack.c.b16 %v727, %v723
    %v1180 = vpack.c.b16 %v732, %v728
    %v1181 = vpack.c.b16 %v733, %v729
    %v1182 = vpack.c.b16 %v734, %v730
    %v1183 = vpack.c.b16 %v735, %v731
    %v1184 = vpack.c.b16 %v740, %v736
    %v1185 = vpack.c.b16 %v741, %v737
    %v1186 = vpack.c.b16 %v742, %v738
    %v1187 = vpack.c.b16 %v743, %v739
    %v1188 = vpack.c.b16 %v748, %v744
    %v1189 = vpack.c.b16 %v749, %v745
    %v1190 = vpack.c.b16 %v750, %v746
    %v1191 = vpack.c.b16 %v751, %v747
    %v1192 = vpack.c.b16 %v756, %v752
    %v1193 = vpack.c.b16 %v757, %v753
    %v1194 = vpack.c.b16 %v758, %v754
    %v1195 = vpack.c.b16 %v759, %v755
    %v1196 = vpack.c.b16 %v764, %v760
    %v1197 = vpack.c.b16 %v765, %v761
    %v1198 = vpack.c.b16 %v766, %v762
    %v1199 = vpack.c.b16 %v767, %v763
    %v1200 = vpack.c.b16 %v772, %v768
    %v1201 = vpack.c.b16 %v773, %v769
    %v1202 = vpack.c.b16 %v774, %v770
    %v1203 = vpack.c.b16 %v775, %v771
    %v1204 = vpack.c.b16 %v780, %v776
    %v1205 = vpack.c.b16 %v781, %v777
    %v1206 = vpack.c.b16 %v782, %v778
    %v1207 = vpack.c.b16 %v783, %v779
    %v1208 = vpack.c.b16 %v788, %v784
    %v1209 = vpack.c.b16 %v789, %v785
    %v1210 = vpack.c.b16 %v790, %v786
    %v1211 = vpack.c.b16 %v791, %v787
    %v1212 = vpack.c.b16 %v796, %v792
    %v1213 = vpack.c.b16 %v797, %v793
    %v1214 = vpack.c.b16 %v798, %v794
    %v1215 = vpack.c.b16 %v799, %v795
    %v1216 = vpack.c.b16 %v804, %v800
    %v1217 = vpack.c.b16 %v805, %v801
    %v1218 = vpack.c.b16 %v806, %v802
    %v1219 = vpack.c.b16 %v807, %v803
    %v1220 = vpack.c.b16 %v812, %v808
    %v1221 = vpack.c.b16 %v813, %v809
    %v1222 = vpack.c.b16 %v814, %v810
    %v1223 = vpack.c.b16 %v815, %v811
    %v1224 = vpack.c.b16 %v820, %v816
    %v1225 = vpack.c.b16 %v821, %v817
    %v1226 = vpack.c.b16 %v822, %v818
    %v1227 = vpack.c.b16 %v823, %v819
    %v1228 = vpack.c.b16 %v828, %v824
    %v1229 = vpack.c.b16 %v829, %v825
    %v1230 = vpack.c.b16 %v830, %v826
    %v1231 = vpack.c.b16 %v831, %v827
    %v1232 = vpack.c.b16 %v836, %v832
    %v1233 = vpack.c.b16 %v837, %v833
    %v1234 = vpack.c.b16 %v838, %v834
    %v1235 = vpack.c.b16 %v839, %v835
    %v1236 = vpack.c.b16 %v844, %v840
    %v1237 = vpack.c.b16 %v845, %v841
    %v1238 = vpack.c.b16 %v846, %v842
    %v1239 = vpack.c.b16 %v847, %v843
    %v1240 = vpack.c.b16 %v852, %v848
    %v1241 = vpack.c.b16 %v853, %v849
    %v1242 = vpack.c.b16 %v854, %v850
    %v1243 = vpack.c.b16 %v855, %v851
    %v1244 = vpack.c.b16 %v860, %v856
    %v1245 = vpack.c.b16 %v861, %v857
    %v1246 = vpack.c.b16 %v862, %v858
    %v1247 = vpack.c.b16 %v863, %v859
    %v1248 = vpack.c.b16 %v868, %v864
    %v1249 = vpack.c.b16 %v869, %v865
    %v1250 = vpack.c.b16 %v870, %v866
    %v1251 = vpack.c.b16 %v871, %v867
    %v1252 = vpack.c.b16 %v876, %v872
    %v1253 = vpack.c.b16 %v877, %v873
    %v1254 = vpack.c.b16 %v878, %v874
    %v1255 = vpack.c.b16 %v879, %v875
    %v1256 = vpack.c.b16 %v884, %v880
    %v1257 = vpack.c.b16 %v885, %v881
    %v1258 = vpack.c.b16 %v886, %v882
    %v1259 = vpack.c.b16 %v887, %v883
    %v1260 = vpack.c.b16 %v892, %v888
    %v1261 = vpack.c.b16 %v893, %v889
    %v1262 = vpack.c.b16 %v894, %v890
    %v1263 = vpack.c.b16 %v895, %v891
    %v1264 = vpack.c.b16 %v900, %v896
    %v1265 = vpack.c.b16 %v901, %v897
    %v1266 = vpack.c.b16 %v902, %v898
    %v1267 = vpack.c.b16 %v903, %v899
    %v1268 = vpack.c.b16 %v908, %v904
    %v1269 = vpack.c.b16 %v909, %v905
    %v1270 = vpack.c.b16 %v910, %v906
    %v1271 = vpack.c.b16 %v911, %v907
    %v1272 = vpack.c.b16 %v916, %v912
    %v1273 = vpack.c.b16 %v917, %v913
    %v1274 = vpack.c.b16 %v918, %v914
    %v1275 = vpack.c.b16 %v919, %v915
    %v1276 = vpack.c.b16 %v924, %v920
    %v1277 = vpack.c.b16 %v925, %v921
    %v1278 = vpack.c.b16 %v926, %v922
    %v1279 = vpack.c.b16 %v927, %v923
    %v1280 = vpack.c.b16 %v932, %v928
    %v1281 = vpack.c.b16 %v933, %v929
    %v1282 = vpack.c.b16 %v934, %v930
    %v1283 = vpack.c.b16 %v935, %v931
    %v1284 = vpack.c.b16 %v940, %v936
    %v1285 = vpack.c.b16 %v941, %v937
    %v1286 = vpack.c.b16 %v942, %v938
    %v1287 = vpack.c.b16 %v943, %v939
    %v1288 = vpack.c.b16 %v948, %v944
    %v1289 = vpack.c.b16 %v949, %v945
    %v1290 = vpack.c.b16 %v950, %v946
    %v1291 = vpack.c.b16 %v951, %v947
    %v1292 = vpack.c.b16 %v956, %v952
    %v1293 = vpack.c.b16 %v957, %v953
    %v1294 = vpack.c.b16 %v958, %v954
    %v1295 = vpack.c.b16 %v959, %v955
    %v1296 = vpack.c.b16 %v964, %v960
    %v1297 = vpack.c.b16 %v965, %v961
    %v1298 = vpack.c.b16 %v966, %v962
    %v1299 = vpack.c.b16 %v967, %v963
    %v1300 = vpack.c.b16 %v972, %v968
    %v1301 = vpack.c.b16 %v973, %v969
    %v1302 = vpack.c.b16 %v974, %v970
    %v1303 = vpack.c.b16 %v975, %v971
    %v1304 = vpack.c.b16 %v980, %v976
    %v1305 = vpack.c.b16 %v981, %v977
    %v1306 = vpack.c.b16 %v982, %v978
    %v1307 = vpack.c.b16 %v983, %v979
    %v1308 = vpack.c.b16 %v988, %v984
    %v1309 = vpack.c.b16 %v989, %v985
    %v1310 = vpack.c.b16 %v990, %v986
    %v1311 = vpack.c.b16 %v991, %v987
    %v1312 = vpack.c.b16 %v996, %v992
    %v1313 = vpack.c.b16 %v997, %v993
    %v1314 = vpack.c.b16 %v998, %v994
    %v1315 = vpack.c.b16 %v999, %v995
    %v1316 = vpack.c.b16 %v1004, %v1000
    %v1317 = vpack.c.b16 %v1005, %v1001
    %v1318 = vpack.c.b16 %v1006, %v1002
    %v1319 = vpack.c.b16 %v1007, %v1003
    %v1320 = vpack.c.b16 %v1012, %v1008
    %v1321 = vpack.c.b16 %v1013, %v1009
    %v1322 = vpack.c.b16 %v1014, %v1010
    %v1323 = vpack.c.b16 %v1015, %v1011
    %v1324 = vpack.c.b16 %v1020, %v1016
    %v1325 = vpack.c.b16 %v1021, %v1017
    %v1326 = vpack.c.b16 %v1022, %v1018
    %v1327 = vpack.c.b16 %v1023, %v1019
    %v1328 = vpack.c.b16 %v1028, %v1024
    %v1329 = vpack.c.b16 %v1029, %v1025
    %v1330 = vpack.c.b16 %v1030, %v1026
    %v1331 = vpack.c.b16 %v1031, %v1027
    %v1332 = vpack.c.b16 %v1036, %v1032
    %v1333 = vpack.c.b16 %v1037, %v1033
    %v1334 = vpack.c.b16 %v1038, %v1034
    %v1335 = vpack.c.b16 %v1039, %v1035
    %v1336 = vpack.c.b16 %v1044, %v1040
    %v1337 = vpack.c.b16 %v1045, %v1041
    %v1338 = vpack.c.b16 %v1046, %v1042
    %v1339 = vpack.c.b16 %v1047, %v1043
    %v1340 = vpack.c.b16 %v1052, %v1048
    %v1341 = vpack.c.b16 %v1053, %v1049
    %v1342 = vpack.c.b16 %v1054, %v1050
    %v1343 = vpack.c.b16 %v1055, %v1051
    %v1344 = vpack.c.b16 %v1060, %v1056
    %v1345 = vpack.c.b16 %v1061, %v1057
    %v1346 = vpack.c.b16 %v1062, %v1058
    %v1347 = vpack.c.b16 %v1063, %v1059
    %v1348 = vpack.c.b16 %v1068, %v1064
    %v1349 = vpack.c.b16 %v1069, %v1065
    %v1350 = vpack.c.b16 %v1070, %v1066
    %v1351 = vpack.c.b16 %v1071, %v1067
    %v1352 = vpack.c.b16 %v1076, %v1072
    %v1353 = vpack.c.b16 %v1077, %v1073
    %v1354 = vpack.c.b16 %v1078, %v1074
    %v1355 = vpack.c.b16 %v1079, %v1075
    %v1356 = vpack.c.b16 %v1084, %v1080
    %v1357 = vpack.c.b16 %v1085, %v1081
    %v1358 = vpack.c.b16 %v1086, %v1082
    %v1359 = vpack.c.b16 %v1087, %v1083
    %v1360 = vpack.c.b16 %v1092, %v1088
    %v1361 = vpack.c.b16 %v1093, %v1089
    %v1362 = vpack.c.b16 %v1094, %v1090
    %v1363 = vpack.c.b16 %v1095, %v1091
    %v1364 = vpack.c.b16 %v1100, %v1096
    %v1365 = vpack.c.b16 %v1101, %v1097
    %v1366 = vpack.c.b16 %v1102, %v1098
    %v1367 = vpack.c.b16 %v1103, %v1099
    %v1368 = vpack.c.b16 %v1108, %v1104
    %v1369 = vpack.c.b16 %v1109, %v1105
    %v1370 = vpack.c.b16 %v1110, %v1106
    %v1371 = vpack.c.b16 %v1111, %v1107
    %v1372 = vpack.c.b16 %v1116, %v1112
    %v1373 = vpack.c.b16 %v1117, %v1113
    %v1374 = vpack.c.b16 %v1118, %v1114
    %v1375 = vpack.c.b16 %v1119, %v1115
    %1632 = vmatprep.subr.bf16.mxu0 %v1149
    %1633 = vmatpush1.bf16.msra.mxu0 %v1148
    %1634 = vmatprep.subr.bf16.mxu0 %v1145
    %1635 = vmatpush1.bf16.msra.mxu0 %v1144
    %1636 = vmatprep.subr.bf16.mxu0 %v1141
    %1637 = vmatpush1.bf16.msra.mxu0 %v1140
    %1638 = vmatprep.subr.bf16.mxu0 %v1137
    %1639 = vmatpush1.bf16.msra.mxu0 %v1136
    %1640 = vmatprep.subr.bf16.mxu0 %v1133
    %1641 = vmatpush1.bf16.msra.mxu0 %v1132
    %1642 = vmatprep.subr.bf16.mxu0 %v1129
    %1643 = vmatpush1.bf16.msra.mxu0 %v1128
    %1644 = vmatprep.subr.bf16.mxu0 %v1125
    %1645 = vmatpush1.bf16.msra.mxu0 %v1124
    %1646 = vmatprep.subr.bf16.mxu0 %v1121
    %1647 = vmatpush1.bf16.msra.mxu0 %v1120
    %1648 = vmatprep.subr.bf16.mxu0 %v1181
    %1649 = vmatpush2.bf16.msra.mxu0 %v1180
    %1650 = vmatprep.subr.bf16.mxu0 %v1177
    %1651 = vmatpush2.bf16.msra.mxu0 %v1176
    %1652 = vmatprep.subr.bf16.mxu0 %v1173
    %1653 = vmatpush2.bf16.msra.mxu0 %v1172
    %1654 = vmatprep.subr.bf16.mxu0 %v1169
    %1655 = vmatpush2.bf16.msra.mxu0 %v1168
    %1656 = vmatprep.subr.bf16.mxu0 %v1165
    %1657 = vmatpush2.bf16.msra.mxu0 %v1164
    %1658 = vmatprep.subr.bf16.mxu0 %v1161
    %1659 = vmatpush2.bf16.msra.mxu0 %v1160
    %1660 = vmatprep.subr.bf16.mxu0 %v1157
    %1661 = vmatpush2.bf16.msra.mxu0 %v1156
    %1662 = vmatprep.subr.bf16.mxu0 %v1153
    %1663 = vmatpush2.bf16.msra.mxu0 %v1152
    %1664 = vmatprep.mubr.bf16.mxu0 %v67
    %1665 = vmatmul.mubr.bf16.gmra.mxu0 %v66
    %v1666 = vpop.f32.mrf.mxu0
    %v1667 = vadd.f32 %v335, %v1666
    %v1668 = vpop.f32.mrf.mxu0
    %v1669 = vadd.f32 %v339, %v1668
    %v1670 = vpop.f32.mrf.mxu0
    %v1671 = vpop.f32.mrf.mxu0
    %1672 = vdwg.mxu0
    %1673 = vmatprep.subr.bf16.mxu0 %v1213
    %1674 = vmatpush1.bf16.msra.mxu0 %v1212
    %1675 = vmatprep.subr.bf16.mxu0 %v1209
    %1676 = vmatpush1.bf16.msra.mxu0 %v1208
    %1677 = vmatprep.subr.bf16.mxu0 %v1205
    %1678 = vmatpush1.bf16.msra.mxu0 %v1204
    %1679 = vmatprep.subr.bf16.mxu0 %v1201
    %1680 = vmatpush1.bf16.msra.mxu0 %v1200
    %1681 = vmatprep.subr.bf16.mxu0 %v1197
    %1682 = vmatpush1.bf16.msra.mxu0 %v1196
    %1683 = vmatprep.subr.bf16.mxu0 %v1193
    %1684 = vmatpush1.bf16.msra.mxu0 %v1192
    %1685 = vmatprep.subr.bf16.mxu0 %v1189
    %1686 = vmatpush1.bf16.msra.mxu0 %v1188
    %1687 = vmatprep.subr.bf16.mxu0 %v1185
    %1688 = vmatpush1.bf16.msra.mxu0 %v1184
    %1689 = vmatprep.subr.bf16.mxu0 %v1245
    %1690 = vmatpush2.bf16.msra.mxu0 %v1244
    %1691 = vmatprep.subr.bf16.mxu0 %v1241
    %1692 = vmatpush2.bf16.msra.mxu0 %v1240
    %1693 = vmatprep.subr.bf16.mxu0 %v1237
    %1694 = vmatpush2.bf16.msra.mxu0 %v1236
    %1695 = vmatprep.subr.bf16.mxu0 %v1233
    %1696 = vmatpush2.bf16.msra.mxu0 %v1232
    %1697 = vmatprep.subr.bf16.mxu0 %v1229
    %1698 = vmatpush2.bf16.msra.mxu0 %v1228
    %1699 = vmatprep.subr.bf16.mxu0 %v1225
    %1700 = vmatpush2.bf16.msra.mxu0 %v1224
    %1701 = vmatprep.subr.bf16.mxu0 %v1221
    %1702 = vmatpush2.bf16.msra.mxu0 %v1220
    %1703 = vmatprep.subr.bf16.mxu0 %v1217
    %1704 = vmatpush2.bf16.msra.mxu0 %v1216
    %1705 = vmatprep.mubr.bf16.mxu0 %v69
    %1706 = vmatmul.mubr.bf16.gmra.mxu0 %v68
    %v1707 = vpop.f32.mrf.mxu0
    %v1708 = vadd.f32 %v1667, %v1707
    %v1709 = vpop.f32.mrf.mxu0
    %v1710 = vadd.f32 %v1669, %v1709
    %v1711 = vpop.f32.mrf.mxu0
    %v1712 = vpop.f32.mrf.mxu0
    %1713 = vdwg.mxu0
    %1714 = vmatprep.subr.bf16.mxu0 %v1277
    %1715 = vmatpush1.bf16.msra.mxu0 %v1276
    %1716 = vmatprep.subr.bf16.mxu0 %v1273
    %1717 = vmatpush1.bf16.msra.mxu0 %v1272
    %1718 = vmatprep.subr.bf16.mxu0 %v1269
    %1719 = vmatpush1.bf16.msra.mxu0 %v1268
    %1720 = vmatprep.subr.bf16.mxu0 %v1265
    %1721 = vmatpush1.bf16.msra.mxu0 %v1264
    %1722 = vmatprep.subr.bf16.mxu0 %v1261
    %1723 = vmatpush1.bf16.msra.mxu0 %v1260
    %1724 = vmatprep.subr.bf16.mxu0 %v1257
    %1725 = vmatpush1.bf16.msra.mxu0 %v1256
    %1726 = vmatprep.subr.bf16.mxu0 %v1253
    %1727 = vmatpush1.bf16.msra.mxu0 %v1252
    %1728 = vmatprep.subr.bf16.mxu0 %v1249
    %1729 = vmatpush1.bf16.msra.mxu0 %v1248
    %1730 = vmatprep.subr.bf16.mxu0 %v1309
    %1731 = vmatpush2.bf16.msra.mxu0 %v1308
    %1732 = vmatprep.subr.bf16.mxu0 %v1305
    %1733 = vmatpush2.bf16.msra.mxu0 %v1304
    %1734 = vmatprep.subr.bf16.mxu0 %v1301
    %1735 = vmatpush2.bf16.msra.mxu0 %v1300
    %1736 = vmatprep.subr.bf16.mxu0 %v1297
    %1737 = vmatpush2.bf16.msra.mxu0 %v1296
    %1738 = vmatprep.subr.bf16.mxu0 %v1293
    %1739 = vmatpush2.bf16.msra.mxu0 %v1292
    %1740 = vmatprep.subr.bf16.mxu0 %v1289
    %1741 = vmatpush2.bf16.msra.mxu0 %v1288
    %1742 = vmatprep.subr.bf16.mxu0 %v1285
    %1743 = vmatpush2.bf16.msra.mxu0 %v1284
    %1744 = vmatprep.subr.bf16.mxu0 %v1281
    %1745 = vmatpush2.bf16.msra.mxu0 %v1280
    %1746 = vmatprep.mubr.bf16.mxu0 %v71
    %1747 = vmatmul.mubr.bf16.gmra.mxu0 %v70
    %v1748 = vpop.f32.mrf.mxu0
    %v1749 = vadd.f32 %v1708, %v1748
    %v1750 = vpop.f32.mrf.mxu0
    %v1751 = vadd.f32 %v1710, %v1750
    %v1752 = vpop.f32.mrf.mxu0
    %v1753 = vpop.f32.mrf.mxu0
    %1754 = vdwg.mxu0
    %1755 = vmatprep.subr.bf16.mxu0 %v1341
    %1756 = vmatpush1.bf16.msra.mxu0 %v1340
    %1757 = vmatprep.subr.bf16.mxu0 %v1337
    %1758 = vmatpush1.bf16.msra.mxu0 %v1336
    %1759 = vmatprep.subr.bf16.mxu0 %v1333
    %1760 = vmatpush1.bf16.msra.mxu0 %v1332
    %1761 = vmatprep.subr.bf16.mxu0 %v1329
    %1762 = vmatpush1.bf16.msra.mxu0 %v1328
    %1763 = vmatprep.subr.bf16.mxu0 %v1325
    %1764 = vmatpush1.bf16.msra.mxu0 %v1324
    %1765 = vmatprep.subr.bf16.mxu0 %v1321
    %1766 = vmatpush1.bf16.msra.mxu0 %v1320
    %1767 = vmatprep.subr.bf16.mxu0 %v1317
    %1768 = vmatpush1.bf16.msra.mxu0 %v1316
    %1769 = vmatprep.subr.bf16.mxu0 %v1313
    %1770 = vmatpush1.bf16.msra.mxu0 %v1312
    %1771 = vmatprep.subr.bf16.mxu0 %v1373
    %1772 = vmatpush2.bf16.msra.mxu0 %v1372
    %1773 = vmatprep.subr.bf16.mxu0 %v1369
    %1774 = vmatpush2.bf16.msra.mxu0 %v1368
    %1775 = vmatprep.subr.bf16.mxu0 %v1365
    %1776 = vmatpush2.bf16.msra.mxu0 %v1364
    %1777 = vmatprep.subr.bf16.mxu0 %v1361
    %1778 = vmatpush2.bf16.msra.mxu0 %v1360
    %1779 = vmatprep.subr.bf16.mxu0 %v1357
    %1780 = vmatpush2.bf16.msra.mxu0 %v1356
    %1781 = vmatprep.subr.bf16.mxu0 %v1353
    %1782 = vmatpush2.bf16.msra.mxu0 %v1352
    %1783 = vmatprep.subr.bf16.mxu0 %v1349
    %1784 = vmatpush2.bf16.msra.mxu0 %v1348
    %1785 = vmatprep.subr.bf16.mxu0 %v1345
    %1786 = vmatpush2.bf16.msra.mxu0 %v1344
    %1787 = vmatprep.mubr.bf16.mxu0 %v73
    %1788 = vmatmul.mubr.bf16.gmra.mxu0 %v72
    %v1789 = vpop.f32.mrf.mxu0
    %v1790 = vadd.f32 %v1749, %v1789
    %v1791 = vpop.f32.mrf.mxu0
    %v1792 = vadd.f32 %v1751, %v1791
    %v1793 = vpop.f32.mrf.mxu0
    %v1794 = vpop.f32.mrf.mxu0
    %1795 = vdwg.mxu0
    %1796 = vmatprep.subr.bf16.mxu0 %v1151
    %1797 = vmatpush1.bf16.msra.mxu0 %v1150
    %1798 = vmatprep.subr.bf16.mxu0 %v1147
    %1799 = vmatpush1.bf16.msra.mxu0 %v1146
    %1800 = vmatprep.subr.bf16.mxu0 %v1143
    %1801 = vmatpush1.bf16.msra.mxu0 %v1142
    %1802 = vmatprep.subr.bf16.mxu0 %v1139
    %1803 = vmatpush1.bf16.msra.mxu0 %v1138
    %1804 = vmatprep.subr.bf16.mxu0 %v1135
    %1805 = vmatpush1.bf16.msra.mxu0 %v1134
    %1806 = vmatprep.subr.bf16.mxu0 %v1131
    %1807 = vmatpush1.bf16.msra.mxu0 %v1130
    %1808 = vmatprep.subr.bf16.mxu0 %v1127
    %1809 = vmatpush1.bf16.msra.mxu0 %v1126
    %1810 = vmatprep.subr.bf16.mxu0 %v1123
    %1811 = vmatpush1.bf16.msra.mxu0 %v1122
    %1812 = vmatprep.subr.bf16.mxu0 %v1183
    %1813 = vmatpush2.bf16.msra.mxu0 %v1182
    %1814 = vmatprep.subr.bf16.mxu0 %v1179
    %1815 = vmatpush2.bf16.msra.mxu0 %v1178
    %1816 = vmatprep.subr.bf16.mxu0 %v1175
    %1817 = vmatpush2.bf16.msra.mxu0 %v1174
    %1818 = vmatprep.subr.bf16.mxu0 %v1171
    %1819 = vmatpush2.bf16.msra.mxu0 %v1170
    %1820 = vmatprep.subr.bf16.mxu0 %v1167
    %1821 = vmatpush2.bf16.msra.mxu0 %v1166
    %1822 = vmatprep.subr.bf16.mxu0 %v1163
    %1823 = vmatpush2.bf16.msra.mxu0 %v1162
    %1824 = vmatprep.subr.bf16.mxu0 %v1159
    %1825 = vmatpush2.bf16.msra.mxu0 %v1158
    %1826 = vmatprep.subr.bf16.mxu0 %v1155
    %1827 = vmatpush2.bf16.msra.mxu0 %v1154
    %1828 = vmatprep.mubr.bf16.mxu0 %v67
    %1829 = vmatmul.mubr.bf16.gmra.mxu0 %v66
    %v1830 = vpop.f32.mrf.mxu0
    %v1831 = vadd.f32 %v343, %v1830
    %v1832 = vpop.f32.mrf.mxu0
    %v1833 = vadd.f32 %v347, %v1832
    %v1834 = vpop.f32.mrf.mxu0
    %v1835 = vpop.f32.mrf.mxu0
    %1836 = vdwg.mxu0
    %1837 = vmatprep.subr.bf16.mxu0 %v1215
    %1838 = vmatpush1.bf16.msra.mxu0 %v1214
    %1839 = vmatprep.subr.bf16.mxu0 %v1211
    %1840 = vmatpush1.bf16.msra.mxu0 %v1210
    %1841 = vmatprep.subr.bf16.mxu0 %v1207
    %1842 = vmatpush1.bf16.msra.mxu0 %v1206
    %1843 = vmatprep.subr.bf16.mxu0 %v1203
    %1844 = vmatpush1.bf16.msra.mxu0 %v1202
    %1845 = vmatprep.subr.bf16.mxu0 %v1199
    %1846 = vmatpush1.bf16.msra.mxu0 %v1198
    %1847 = vmatprep.subr.bf16.mxu0 %v1195
    %1848 = vmatpush1.bf16.msra.mxu0 %v1194
    %1849 = vmatprep.subr.bf16.mxu0 %v1191
    %1850 = vmatpush1.bf16.msra.mxu0 %v1190
    %1851 = vmatprep.subr.bf16.mxu0 %v1187
    %1852 = vmatpush1.bf16.msra.mxu0 %v1186
    %1853 = vmatprep.subr.bf16.mxu0 %v1247
    %1854 = vmatpush2.bf16.msra.mxu0 %v1246
    %1855 = vmatprep.subr.bf16.mxu0 %v1243
    %1856 = vmatpush2.bf16.msra.mxu0 %v1242
    %1857 = vmatprep.subr.bf16.mxu0 %v1239
    %1858 = vmatpush2.bf16.msra.mxu0 %v1238
    %1859 = vmatprep.subr.bf16.mxu0 %v1235
    %1860 = vmatpush2.bf16.msra.mxu0 %v1234
    %1861 = vmatprep.subr.bf16.mxu0 %v1231
    %1862 = vmatpush2.bf16.msra.mxu0 %v1230
    %1863 = vmatprep.subr.bf16.mxu0 %v1227
    %1864 = vmatpush2.bf16.msra.mxu0 %v1226
    %1865 = vmatprep.subr.bf16.mxu0 %v1223
    %1866 = vmatpush2.bf16.msra.mxu0 %v1222
    %1867 = vmatprep.subr.bf16.mxu0 %v1219
    %1868 = vmatpush2.bf16.msra.mxu0 %v1218
    %1869 = vmatprep.mubr.bf16.mxu0 %v69
    %1870 = vmatmul.mubr.bf16.gmra.mxu0 %v68
    %v1871 = vpop.f32.mrf.mxu0
    %v1872 = vadd.f32 %v1831, %v1871
    %v1873 = vpop.f32.mrf.mxu0
    %v1874 = vadd.f32 %v1833, %v1873
    %v1875 = vpop.f32.mrf.mxu0
    %v1876 = vpop.f32.mrf.mxu0
    %1877 = vdwg.mxu0
    %1878 = vmatprep.subr.bf16.mxu0 %v1279
    %1879 = vmatpush1.bf16.msra.mxu0 %v1278
    %1880 = vmatprep.subr.bf16.mxu0 %v1275
    %1881 = vmatpush1.bf16.msra.mxu0 %v1274
    %1882 = vmatprep.subr.bf16.mxu0 %v1271
    %1883 = vmatpush1.bf16.msra.mxu0 %v1270
    %1884 = vmatprep.subr.bf16.mxu0 %v1267
    %1885 = vmatpush1.bf16.msra.mxu0 %v1266
    %1886 = vmatprep.subr.bf16.mxu0 %v1263
    %1887 = vmatpush1.bf16.msra.mxu0 %v1262
    %1888 = vmatprep.subr.bf16.mxu0 %v1259
    %1889 = vmatpush1.bf16.msra.mxu0 %v1258
    %1890 = vmatprep.subr.bf16.mxu0 %v1255
    %1891 = vmatpush1.bf16.msra.mxu0 %v1254
    %1892 = vmatprep.subr.bf16.mxu0 %v1251
    %1893 = vmatpush1.bf16.msra.mxu0 %v1250
    %1894 = vmatprep.subr.bf16.mxu0 %v1311
    %1895 = vmatpush2.bf16.msra.mxu0 %v1310
    %1896 = vmatprep.subr.bf16.mxu0 %v1307
    %1897 = vmatpush2.bf16.msra.mxu0 %v1306
    %1898 = vmatprep.subr.bf16.mxu0 %v1303
    %1899 = vmatpush2.bf16.msra.mxu0 %v1302
    %1900 = vmatprep.subr.bf16.mxu0 %v1299
    %1901 = vmatpush2.bf16.msra.mxu0 %v1298
    %1902 = vmatprep.subr.bf16.mxu0 %v1295
    %1903 = vmatpush2.bf16.msra.mxu0 %v1294
    %1904 = vmatprep.subr.bf16.mxu0 %v1291
    %1905 = vmatpush2.bf16.msra.mxu0 %v1290
    %1906 = vmatprep.subr.bf16.mxu0 %v1287
    %1907 = vmatpush2.bf16.msra.mxu0 %v1286
    %1908 = vmatprep.subr.bf16.mxu0 %v1283
    %1909 = vmatpush2.bf16.msra.mxu0 %v1282
    %1910 = vmatprep.mubr.bf16.mxu0 %v71
    %1911 = vmatmul.mubr.bf16.gmra.mxu0 %v70
    %v1912 = vpop.f32.mrf.mxu0
    %v1913 = vadd.f32 %v1872, %v1912
    %v1914 = vpop.f32.mrf.mxu0
    %v1915 = vadd.f32 %v1874, %v1914
    %v1916 = vpop.f32.mrf.mxu0
    %v1917 = vpop.f32.mrf.mxu0
    %1918 = vdwg.mxu0
    %1919 = vmatprep.subr.bf16.mxu0 %v1343
    %1920 = vmatpush1.bf16.msra.mxu0 %v1342
    %1921 = vmatprep.subr.bf16.mxu0 %v1339
    %1922 = vmatpush1.bf16.msra.mxu0 %v1338
    %1923 = vmatprep.subr.bf16.mxu0 %v1335
    %1924 = vmatpush1.bf16.msra.mxu0 %v1334
    %1925 = vmatprep.subr.bf16.mxu0 %v1331
    %1926 = vmatpush1.bf16.msra.mxu0 %v1330
    %1927 = vmatprep.subr.bf16.mxu0 %v1327
    %1928 = vmatpush1.bf16.msra.mxu0 %v1326
    %1929 = vmatprep.subr.bf16.mxu0 %v1323
    %1930 = vmatpush1.bf16.msra.mxu0 %v1322
    %1931 = vmatprep.subr.bf16.mxu0 %v1319
    %1932 = vmatpush1.bf16.msra.mxu0 %v1318
    %1933 = vmatprep.subr.bf16.mxu0 %v1315
    %1934 = vmatpush1.bf16.msra.mxu0 %v1314
    %1935 = vmatprep.subr.bf16.mxu0 %v1375
    %1936 = vmatpush2.bf16.msra.mxu0 %v1374
    %1937 = vmatprep.subr.bf16.mxu0 %v1371
    %1938 = vmatpush2.bf16.msra.mxu0 %v1370
    %1939 = vmatprep.subr.bf16.mxu0 %v1367
    %1940 = vmatpush2.bf16.msra.mxu0 %v1366
    %1941 = vmatprep.subr.bf16.mxu0 %v1363
    %1942 = vmatpush2.bf16.msra.mxu0 %v1362
    %1943 = vmatprep.subr.bf16.mxu0 %v1359
    %1944 = vmatpush2.bf16.msra.mxu0 %v1358
    %1945 = vmatprep.subr.bf16.mxu0 %v1355
    %1946 = vmatpush2.bf16.msra.mxu0 %v1354
    %1947 = vmatprep.subr.bf16.mxu0 %v1351
    %1948 = vmatpush2.bf16.msra.mxu0 %v1350
    %1949 = vmatprep.subr.bf16.mxu0 %v1347
    %1950 = vmatpush2.bf16.msra.mxu0 %v1346
    %1951 = vmatprep.mubr.bf16.mxu0 %v73
    %1952 = vmatmul.mubr.bf16.gmra.mxu0 %v72
    %v1953 = vpop.f32.mrf.mxu0
    %v1954 = vadd.f32 %v1913, %v1953
    %v1955 = vpop.f32.mrf.mxu0
    %v1956 = vadd.f32 %v1915, %v1955
    %v1957 = vpop.f32.mrf.mxu0
    %v1958 = vpop.f32.mrf.mxu0
    %1959 = vdwg.mxu0
    %v1960 = vmax.f32 %v1790, 0.0
    %v1961 = vmax.f32 %v1792, 0.0
    %v1962 = vmax.f32 %v1954, 0.0
    %v1963 = vmax.f32 %v1956, 0.0
    %v1964 = vpack.c.bf16 %v1960, %v1960
    %v1965 = vpack.c.bf16 %v1961, %v1961
    %v1966 = vpack.c.bf16 %v1962, %v1962
    %v1967 = vpack.c.bf16 %v1963, %v1963
    %v1972 = vunpack.c.l.b16 %v1964
    %v1973 = vunpack.c.l.b16 %v1965
    %v1974 = vunpack.c.l.b16 %v1966
    %v1975 = vunpack.c.l.b16 %v1967
    %v1976 = vpack.c.b16 %v1973, %v1972
    %v1977 = vpack.c.b16 %v1975, %v1974
    %1980 = vst [vmem:[%s8] sm:$0xff] %v1976
    %1981 = vst [vmem:[%s8 + $0x8] sm:$0xff] %v1977
    %v1982 = vld [vmem:[#allocation4] sm:$0xff]
    %v1983 = vld [vmem:[#allocation4 + $0x8] sm:$0xff]
    %v1984 = vld [vmem:[#allocation4 + $0x10] sm:$0xff]
    %v1985 = vld [vmem:[#allocation4 + $0x18] sm:$0xff]
    %v1986 = vld [vmem:[#allocation4 + $0x20] sm:$0xff]
    %v1987 = vld [vmem:[#allocation4 + $0x28] sm:$0xff]
    %v1988 = vld [vmem:[#allocation4 + $0x30] sm:$0xff]
    %v1989 = vld [vmem:[#allocation4 + $0x38] sm:$0xff]
    %v1990 = vld [vmem:[#allocation4 + $0x40] sm:$0xff]
    %v1991 = vld [vmem:[#allocation4 + $0x48] sm:$0xff]
    %v1992 = vld [vmem:[#allocation4 + $0x50] sm:$0xff]
    %v1993 = vld [vmem:[#allocation4 + $0x58] sm:$0xff]
    %v1994 = vld [vmem:[#allocation4 + $0x60] sm:$0xff]
    %v1995 = vld [vmem:[#allocation4 + $0x68] sm:$0xff]
    %v1996 = vld [vmem:[#allocation4 + $0x70] sm:$0xff]
    %v1997 = vld [vmem:[#allocation4 + $0x78] sm:$0xff]
    %v1998 = vld [vmem:[#allocation4 + $0x80] sm:$0xff]
    %v1999 = vld [vmem:[#allocation4 + $0x88] sm:$0xff]
    %v2000 = vld [vmem:[#allocation4 + $0x90] sm:$0xff]
    %v2001 = vld [vmem:[#allocation4 + $0x98] sm:$0xff]
    %v2002 = vld [vmem:[#allocation4 + $0xa0] sm:$0xff]
    %v2003 = vld [vmem:[#allocation4 + $0xa8] sm:$0xff]
    %v2004 = vld [vmem:[#allocation4 + $0xb0] sm:$0xff]
    %v2005 = vld [vmem:[#allocation4 + $0xb8] sm:$0xff]
    %v2006 = vld [vmem:[#allocation4 + $0xc0] sm:$0xff]
    %v2007 = vld [vmem:[#allocation4 + $0xc8] sm:$0xff]
    %v2008 = vld [vmem:[#allocation4 + $0xd0] sm:$0xff]
    %v2009 = vld [vmem:[#allocation4 + $0xd8] sm:$0xff]
    %v2010 = vld [vmem:[#allocation4 + $0xe0] sm:$0xff]
    %v2011 = vld [vmem:[#allocation4 + $0xe8] sm:$0xff]
    %v2012 = vld [vmem:[#allocation4 + $0xf0] sm:$0xff]
    %v2013 = vld [vmem:[#allocation4 + $0xf8] sm:$0xff]
    %v2014 = vld [vmem:[#allocation4 + $0x100] sm:$0xff]
    %v2015 = vld [vmem:[#allocation4 + $0x108] sm:$0xff]
    %v2016 = vld [vmem:[#allocation4 + $0x110] sm:$0xff]
    %v2017 = vld [vmem:[#allocation4 + $0x118] sm:$0xff]
    %v2018 = vld [vmem:[#allocation4 + $0x120] sm:$0xff]
    %v2019 = vld [vmem:[#allocation4 + $0x128] sm:$0xff]
    %v2020 = vld [vmem:[#allocation4 + $0x130] sm:$0xff]
    %v2021 = vld [vmem:[#allocation4 + $0x138] sm:$0xff]
    %v2022 = vld [vmem:[#allocation4 + $0x140] sm:$0xff]
    %v2023 = vld [vmem:[#allocation4 + $0x148] sm:$0xff]
    %v2024 = vld [vmem:[#allocation4 + $0x150] sm:$0xff]
    %v2025 = vld [vmem:[#allocation4 + $0x158] sm:$0xff]
    %v2026 = vld [vmem:[#allocation4 + $0x160] sm:$0xff]
    %v2027 = vld [vmem:[#allocation4 + $0x168] sm:$0xff]
    %v2028 = vld [vmem:[#allocation4 + $0x170] sm:$0xff]
    %v2029 = vld [vmem:[#allocation4 + $0x178] sm:$0xff]
    %v2030 = vld [vmem:[#allocation4 + $0x180] sm:$0xff]
    %v2031 = vld [vmem:[#allocation4 + $0x188] sm:$0xff]
    %v2032 = vld [vmem:[#allocation4 + $0x190] sm:$0xff]
    %v2033 = vld [vmem:[#allocation4 + $0x198] sm:$0xff]
    %v2034 = vld [vmem:[#allocation4 + $0x1a0] sm:$0xff]
    %v2035 = vld [vmem:[#allocation4 + $0x1a8] sm:$0xff]
    %v2036 = vld [vmem:[#allocation4 + $0x1b0] sm:$0xff]
    %v2037 = vld [vmem:[#allocation4 + $0x1b8] sm:$0xff]
    %v2038 = vld [vmem:[#allocation4 + $0x1c0] sm:$0xff]
    %v2039 = vld [vmem:[#allocation4 + $0x1c8] sm:$0xff]
    %v2040 = vld [vmem:[#allocation4 + $0x1d0] sm:$0xff]
    %v2041 = vld [vmem:[#allocation4 + $0x1d8] sm:$0xff]
    %v2042 = vld [vmem:[#allocation4 + $0x1e0] sm:$0xff]
    %v2043 = vld [vmem:[#allocation4 + $0x1e8] sm:$0xff]
    %v2044 = vld [vmem:[#allocation4 + $0x1f0] sm:$0xff]
    %v2045 = vld [vmem:[#allocation4 + $0x1f8] sm:$0xff]
    %v2046 = vld [vmem:[%s4] sm:$0x3]
    %v2048 = vlaneseq
    %v2049 = vshrl.u32 %v2048, 7
    %v2050 = vsub.s32 0, %v2049
    %v2051 = vrot.slane %v2046, %v2050
    %v2052 = vlaneseq
    %v2053 = vshrl.u32 %v2052, 7
    %v2054 = vsub.s32 1, %v2053
    %v2055 = vrot.slane %v2046, %v2054
    %v2122 = vunpack.c.l.b16 %v1982
    %v2123 = vunpack.c.h.b16 %v1982
    %v2124 = vunpack.c.l.b16 %v1983
    %v2125 = vunpack.c.h.b16 %v1983
    %v2126 = vunpack.c.l.b16 %v1984
    %v2127 = vunpack.c.h.b16 %v1984
    %v2128 = vunpack.c.l.b16 %v1985
    %v2129 = vunpack.c.h.b16 %v1985
    %v2130 = vunpack.c.l.b16 %v1986
    %v2131 = vunpack.c.h.b16 %v1986
    %v2132 = vunpack.c.l.b16 %v1987
    %v2133 = vunpack.c.h.b16 %v1987
    %v2134 = vunpack.c.l.b16 %v1988
    %v2135 = vunpack.c.h.b16 %v1988
    %v2136 = vunpack.c.l.b16 %v1989
    %v2137 = vunpack.c.h.b16 %v1989
    %v2138 = vunpack.c.l.b16 %v1990
    %v2139 = vunpack.c.h.b16 %v1990
    %v2140 = vunpack.c.l.b16 %v1991
    %v2141 = vunpack.c.h.b16 %v1991
    %v2142 = vunpack.c.l.b16 %v1992
    %v2143 = vunpack.c.h.b16 %v1992
    %v2144 = vunpack.c.l.b16 %v1993
    %v2145 = vunpack.c.h.b16 %v1993
    %v2146 = vunpack.c.l.b16 %v1994
    %v2147 = vunpack.c.h.b16 %v1994
    %v2148 = vunpack.c.l.b16 %v1995
    %v2149 = vunpack.c.h.b16 %v1995
    %v2150 = vunpack.c.l.b16 %v1996
    %v2151 = vunpack.c.h.b16 %v1996
    %v2152 = vunpack.c.l.b16 %v1997
    %v2153 = vunpack.c.h.b16 %v1997
    %v2154 = vunpack.c.l.b16 %v1998
    %v2155 = vunpack.c.h.b16 %v1998
    %v2156 = vunpack.c.l.b16 %v1999
    %v2157 = vunpack.c.h.b16 %v1999
    %v2158 = vunpack.c.l.b16 %v2000
    %v2159 = vunpack.c.h.b16 %v2000
    %v2160 = vunpack.c.l.b16 %v2001
    %v2161 = vunpack.c.h.b16 %v2001
    %v2162 = vunpack.c.l.b16 %v2002
    %v2163 = vunpack.c.h.b16 %v2002
    %v2164 = vunpack.c.l.b16 %v2003
    %v2165 = vunpack.c.h.b16 %v2003
    %v2166 = vunpack.c.l.b16 %v2004
    %v2167 = vunpack.c.h.b16 %v2004
    %v2168 = vunpack.c.l.b16 %v2005
    %v2169 = vunpack.c.h.b16 %v2005
    %v2170 = vunpack.c.l.b16 %v2006
    %v2171 = vunpack.c.h.b16 %v2006
    %v2172 = vunpack.c.l.b16 %v2007
    %v2173 = vunpack.c.h.b16 %v2007
    %v2174 = vunpack.c.l.b16 %v2008
    %v2175 = vunpack.c.h.b16 %v2008
    %v2176 = vunpack.c.l.b16 %v2009
    %v2177 = vunpack.c.h.b16 %v2009
    %v2178 = vunpack.c.l.b16 %v2010
    %v2179 = vunpack.c.h.b16 %v2010
    %v2180 = vunpack.c.l.b16 %v2011
    %v2181 = vunpack.c.h.b16 %v2011
    %v2182 = vunpack.c.l.b16 %v2012
    %v2183 = vunpack.c.h.b16 %v2012
    %v2184 = vunpack.c.l.b16 %v2013
    %v2185 = vunpack.c.h.b16 %v2013
    %v2186 = vunpack.c.l.b16 %v2014
    %v2187 = vunpack.c.h.b16 %v2014
    %v2188 = vunpack.c.l.b16 %v2015
    %v2189 = vunpack.c.h.b16 %v2015
    %v2190 = vunpack.c.l.b16 %v2016
    %v2191 = vunpack.c.h.b16 %v2016
    %v2192 = vunpack.c.l.b16 %v2017
    %v2193 = vunpack.c.h.b16 %v2017
    %v2194 = vunpack.c.l.b16 %v2018
    %v2195 = vunpack.c.h.b16 %v2018
    %v2196 = vunpack.c.l.b16 %v2019
    %v2197 = vunpack.c.h.b16 %v2019
    %v2198 = vunpack.c.l.b16 %v2020
    %v2199 = vunpack.c.h.b16 %v2020
    %v2200 = vunpack.c.l.b16 %v2021
    %v2201 = vunpack.c.h.b16 %v2021
    %v2202 = vunpack.c.l.b16 %v2022
    %v2203 = vunpack.c.h.b16 %v2022
    %v2204 = vunpack.c.l.b16 %v2023
    %v2205 = vunpack.c.h.b16 %v2023
    %v2206 = vunpack.c.l.b16 %v2024
    %v2207 = vunpack.c.h.b16 %v2024
    %v2208 = vunpack.c.l.b16 %v2025
    %v2209 = vunpack.c.h.b16 %v2025
    %v2210 = vunpack.c.l.b16 %v2026
    %v2211 = vunpack.c.h.b16 %v2026
    %v2212 = vunpack.c.l.b16 %v2027
    %v2213 = vunpack.c.h.b16 %v2027
    %v2214 = vunpack.c.l.b16 %v2028
    %v2215 = vunpack.c.h.b16 %v2028
    %v2216 = vunpack.c.l.b16 %v2029
    %v2217 = vunpack.c.h.b16 %v2029
    %v2218 = vunpack.c.l.b16 %v2030
    %v2219 = vunpack.c.h.b16 %v2030
    %v2220 = vunpack.c.l.b16 %v2031
    %v2221 = vunpack.c.h.b16 %v2031
    %v2222 = vunpack.c.l.b16 %v2032
    %v2223 = vunpack.c.h.b16 %v2032
    %v2224 = vunpack.c.l.b16 %v2033
    %v2225 = vunpack.c.h.b16 %v2033
    %v2226 = vunpack.c.l.b16 %v2034
    %v2227 = vunpack.c.h.b16 %v2034
    %v2228 = vunpack.c.l.b16 %v2035
    %v2229 = vunpack.c.h.b16 %v2035
    %v2230 = vunpack.c.l.b16 %v2036
    %v2231 = vunpack.c.h.b16 %v2036
    %v2232 = vunpack.c.l.b16 %v2037
    %v2233 = vunpack.c.h.b16 %v2037
    %v2234 = vunpack.c.l.b16 %v2038
    %v2235 = vunpack.c.h.b16 %v2038
    %v2236 = vunpack.c.l.b16 %v2039
    %v2237 = vunpack.c.h.b16 %v2039
    %v2238 = vunpack.c.l.b16 %v2040
    %v2239 = vunpack.c.h.b16 %v2040
    %v2240 = vunpack.c.l.b16 %v2041
    %v2241 = vunpack.c.h.b16 %v2041
    %v2242 = vunpack.c.l.b16 %v2042
    %v2243 = vunpack.c.h.b16 %v2042
    %v2244 = vunpack.c.l.b16 %v2043
    %v2245 = vunpack.c.h.b16 %v2043
    %v2246 = vunpack.c.l.b16 %v2044
    %v2247 = vunpack.c.h.b16 %v2044
    %v2248 = vunpack.c.l.b16 %v2045
    %v2249 = vunpack.c.h.b16 %v2045
    %v2250 = vpack.c.b16 %v2124, %v2122
    %v2251 = vpack.c.b16 %v2125, %v2123
    %v2252 = vpack.c.b16 %v2128, %v2126
    %v2253 = vpack.c.b16 %v2129, %v2127
    %v2254 = vpack.c.b16 %v2132, %v2130
    %v2255 = vpack.c.b16 %v2133, %v2131
    %v2256 = vpack.c.b16 %v2136, %v2134
    %v2257 = vpack.c.b16 %v2137, %v2135
    %v2258 = vpack.c.b16 %v2140, %v2138
    %v2259 = vpack.c.b16 %v2141, %v2139
    %v2260 = vpack.c.b16 %v2144, %v2142
    %v2261 = vpack.c.b16 %v2145, %v2143
    %v2262 = vpack.c.b16 %v2148, %v2146
    %v2263 = vpack.c.b16 %v2149, %v2147
    %v2264 = vpack.c.b16 %v2152, %v2150
    %v2265 = vpack.c.b16 %v2153, %v2151
    %v2266 = vpack.c.b16 %v2156, %v2154
    %v2267 = vpack.c.b16 %v2157, %v2155
    %v2268 = vpack.c.b16 %v2160, %v2158
    %v2269 = vpack.c.b16 %v2161, %v2159
    %v2270 = vpack.c.b16 %v2164, %v2162
    %v2271 = vpack.c.b16 %v2165, %v2163
    %v2272 = vpack.c.b16 %v2168, %v2166
    %v2273 = vpack.c.b16 %v2169, %v2167
    %v2274 = vpack.c.b16 %v2172, %v2170
    %v2275 = vpack.c.b16 %v2173, %v2171
    %v2276 = vpack.c.b16 %v2176, %v2174
    %v2277 = vpack.c.b16 %v2177, %v2175
    %v2278 = vpack.c.b16 %v2180, %v2178
    %v2279 = vpack.c.b16 %v2181, %v2179
    %v2280 = vpack.c.b16 %v2184, %v2182
    %v2281 = vpack.c.b16 %v2185, %v2183
    %v2282 = vpack.c.b16 %v2188, %v2186
    %v2283 = vpack.c.b16 %v2189, %v2187
    %v2284 = vpack.c.b16 %v2192, %v2190
    %v2285 = vpack.c.b16 %v2193, %v2191
    %v2286 = vpack.c.b16 %v2196, %v2194
    %v2287 = vpack.c.b16 %v2197, %v2195
    %v2288 = vpack.c.b16 %v2200, %v2198
    %v2289 = vpack.c.b16 %v2201, %v2199
    %v2290 = vpack.c.b16 %v2204, %v2202
    %v2291 = vpack.c.b16 %v2205, %v2203
    %v2292 = vpack.c.b16 %v2208, %v2206
    %v2293 = vpack.c.b16 %v2209, %v2207
    %v2294 = vpack.c.b16 %v2212, %v2210
    %v2295 = vpack.c.b16 %v2213, %v2211
    %v2296 = vpack.c.b16 %v2216, %v2214
    %v2297 = vpack.c.b16 %v2217, %v2215
    %v2298 = vpack.c.b16 %v2220, %v2218
    %v2299 = vpack.c.b16 %v2221, %v2219
    %v2300 = vpack.c.b16 %v2224, %v2222
    %v2301 = vpack.c.b16 %v2225, %v2223
    %v2302 = vpack.c.b16 %v2228, %v2226
    %v2303 = vpack.c.b16 %v2229, %v2227
    %v2304 = vpack.c.b16 %v2232, %v2230
    %v2305 = vpack.c.b16 %v2233, %v2231
    %v2306 = vpack.c.b16 %v2236, %v2234
    %v2307 = vpack.c.b16 %v2237, %v2235
    %v2308 = vpack.c.b16 %v2240, %v2238
    %v2309 = vpack.c.b16 %v2241, %v2239
    %v2310 = vpack.c.b16 %v2244, %v2242
    %v2311 = vpack.c.b16 %v2245, %v2243
    %v2312 = vpack.c.b16 %v2248, %v2246
    %v2313 = vpack.c.b16 %v2249, %v2247
    %2378 = vmatprep.subr.bf16.mxu0 %v2265
    %2379 = vmatpush1.bf16.msra.mxu0 %v2264
    %2380 = vmatprep.subr.bf16.mxu0 %v2263
    %2381 = vmatpush1.bf16.msra.mxu0 %v2262
    %2382 = vmatprep.subr.bf16.mxu0 %v2261
    %2383 = vmatpush1.bf16.msra.mxu0 %v2260
    %2384 = vmatprep.subr.bf16.mxu0 %v2259
    %2385 = vmatpush1.bf16.msra.mxu0 %v2258
    %2386 = vmatprep.subr.bf16.mxu0 %v2257
    %2387 = vmatpush1.bf16.msra.mxu0 %v2256
    %2388 = vmatprep.subr.bf16.mxu0 %v2255
    %2389 = vmatpush1.bf16.msra.mxu0 %v2254
    %2390 = vmatprep.subr.bf16.mxu0 %v2253
    %2391 = vmatpush1.bf16.msra.mxu0 %v2252
    %2392 = vmatprep.subr.bf16.mxu0 %v2251
    %2393 = vmatpush1.bf16.msra.mxu0 %v2250
    %2394 = vmatprep.subr.bf16.mxu0 %v2281
    %2395 = vmatpush2.bf16.msra.mxu0 %v2280
    %2396 = vmatprep.subr.bf16.mxu0 %v2279
    %2397 = vmatpush2.bf16.msra.mxu0 %v2278
    %2398 = vmatprep.subr.bf16.mxu0 %v2277
    %2399 = vmatpush2.bf16.msra.mxu0 %v2276
    %2400 = vmatprep.subr.bf16.mxu0 %v2275
    %2401 = vmatpush2.bf16.msra.mxu0 %v2274
    %2402 = vmatprep.subr.bf16.mxu0 %v2273
    %2403 = vmatpush2.bf16.msra.mxu0 %v2272
    %2404 = vmatprep.subr.bf16.mxu0 %v2271
    %2405 = vmatpush2.bf16.msra.mxu0 %v2270
    %2406 = vmatprep.subr.bf16.mxu0 %v2269
    %2407 = vmatpush2.bf16.msra.mxu0 %v2268
    %2408 = vmatprep.subr.bf16.mxu0 %v2267
    %2409 = vmatpush2.bf16.msra.mxu0 %v2266
    %2410 = vmatprep.mubr.bf16.mxu0 %v1965
    %2411 = vmatmul.mubr.bf16.gmra.mxu0 %v1964
    %v2412 = vpop.f32.mrf.mxu0
    %v2413 = vadd.f32 %v2051, %v2412
    %v2414 = vpop.f32.mrf.mxu0
    %v2415 = vadd.f32 %v2055, %v2414
    %v2416 = vpop.f32.mrf.mxu0
    %v2417 = vpop.f32.mrf.mxu0
    %2418 = vdwg.mxu0
    %2419 = vmatprep.subr.bf16.mxu0 %v2297
    %2420 = vmatpush1.bf16.msra.mxu0 %v2296
    %2421 = vmatprep.subr.bf16.mxu0 %v2295
    %2422 = vmatpush1.bf16.msra.mxu0 %v2294
    %2423 = vmatprep.subr.bf16.mxu0 %v2293
    %2424 = vmatpush1.bf16.msra.mxu0 %v2292
    %2425 = vmatprep.subr.bf16.mxu0 %v2291
    %2426 = vmatpush1.bf16.msra.mxu0 %v2290
    %2427 = vmatprep.subr.bf16.mxu0 %v2289
    %2428 = vmatpush1.bf16.msra.mxu0 %v2288
    %2429 = vmatprep.subr.bf16.mxu0 %v2287
    %2430 = vmatpush1.bf16.msra.mxu0 %v2286
    %2431 = vmatprep.subr.bf16.mxu0 %v2285
    %2432 = vmatpush1.bf16.msra.mxu0 %v2284
    %2433 = vmatprep.subr.bf16.mxu0 %v2283
    %2434 = vmatpush1.bf16.msra.mxu0 %v2282
    %2435 = vmatprep.subr.bf16.mxu0 %v2313
    %2436 = vmatpush2.bf16.msra.mxu0 %v2312
    %2437 = vmatprep.subr.bf16.mxu0 %v2311
    %2438 = vmatpush2.bf16.msra.mxu0 %v2310
    %2439 = vmatprep.subr.bf16.mxu0 %v2309
    %2440 = vmatpush2.bf16.msra.mxu0 %v2308
    %2441 = vmatprep.subr.bf16.mxu0 %v2307
    %2442 = vmatpush2.bf16.msra.mxu0 %v2306
    %2443 = vmatprep.subr.bf16.mxu0 %v2305
    %2444 = vmatpush2.bf16.msra.mxu0 %v2304
    %2445 = vmatprep.subr.bf16.mxu0 %v2303
    %2446 = vmatpush2.bf16.msra.mxu0 %v2302
    %2447 = vmatprep.subr.bf16.mxu0 %v2301
    %2448 = vmatpush2.bf16.msra.mxu0 %v2300
    %2449 = vmatprep.subr.bf16.mxu0 %v2299
    %2450 = vmatpush2.bf16.msra.mxu0 %v2298
    %2451 = vmatprep.mubr.bf16.mxu0 %v1967
    %2452 = vmatmul.mubr.bf16.gmra.mxu0 %v1966
    %v2453 = vpop.f32.mrf.mxu0
    %v2454 = vadd.f32 %v2413, %v2453
    %v2455 = vpop.f32.mrf.mxu0
    %v2456 = vadd.f32 %v2415, %v2455
    %v2457 = vpop.f32.mrf.mxu0
    %v2458 = vpop.f32.mrf.mxu0
    %2459 = vdwg.mxu0
    %v2460 = vmax.f32 %v2454, 0.0
    %v2461 = vmax.f32 %v2456, 0.0
    %v2462 = vpack.c.bf16 %v2460, %v2460
    %v2463 = vpack.c.bf16 %v2461, %v2461
    %v2466 = vunpack.c.l.b16 %v2462
    %v2467 = vunpack.c.l.b16 %v2463
    %v2468 = vpack.c.b16 %v2467, %v2466
    %2470 = vst [vmem:[%s9] sm:$0xff] %v2468
    %v2471 = vld [vmem:[%s5] sm:$0xf]
    %v2472 = vld [vmem:[%s5 + $0x4] sm:$0xf]
    %v2473 = vld [vmem:[%s5 + $0x8] sm:$0xf]
    %v2474 = vld [vmem:[%s5 + $0xc] sm:$0xf]
    %v2475 = vld [vmem:[%s5 + $0x10] sm:$0xf]
    %v2476 = vld [vmem:[%s5 + $0x14] sm:$0xf]
    %v2477 = vld [vmem:[%s5 + $0x18] sm:$0xf]
    %v2478 = vld [vmem:[%s5 + $0x1c] sm:$0xf]
    %v2479 = vld [vmem:[%s5 + $0x20] sm:$0xf]
    %v2480 = vld [vmem:[%s5 + $0x24] sm:$0xf]
    %v2481 = vld [vmem:[%s5 + $0x28] sm:$0xf]
    %v2482 = vld [vmem:[%s5 + $0x2c] sm:$0xf]
    %v2483 = vld [vmem:[%s5 + $0x30] sm:$0xf]
    %v2484 = vld [vmem:[%s5 + $0x34] sm:$0xf]
    %v2485 = vld [vmem:[%s5 + $0x38] sm:$0xf]
    %v2486 = vld [vmem:[%s5 + $0x3c] sm:$0xf]
    %v2487 = vld [vmem:[%s5 + $0x40] sm:$0xf]
    %v2488 = vld [vmem:[%s5 + $0x44] sm:$0xf]
    %v2489 = vld [vmem:[%s5 + $0x48] sm:$0xf]
    %v2490 = vld [vmem:[%s5 + $0x4c] sm:$0xf]
    %v2491 = vld [vmem:[%s5 + $0x50] sm:$0xf]
    %v2492 = vld [vmem:[%s5 + $0x54] sm:$0xf]
    %v2493 = vld [vmem:[%s5 + $0x58] sm:$0xf]
    %v2494 = vld [vmem:[%s5 + $0x5c] sm:$0xf]
    %v2495 = vld [vmem:[%s5 + $0x60] sm:$0xf]
    %v2496 = vld [vmem:[%s5 + $0x64] sm:$0xf]
    %v2497 = vld [vmem:[%s5 + $0x68] sm:$0xf]
    %v2498 = vld [vmem:[%s5 + $0x6c] sm:$0xf]
    %v2499 = vld [vmem:[%s5 + $0x70] sm:$0xf]
    %v2500 = vld [vmem:[%s5 + $0x74] sm:$0xf]
    %v2501 = vld [vmem:[%s5 + $0x78] sm:$0xf]
    %v2502 = vld [vmem:[%s5 + $0x7c] sm:$0xf]
    %v2503 = vld [vmem:[%s6] sm:$0x1]
    %v2505 = vlaneseq
    %v2506 = vshrl.u32 %v2505, 7
    %v2507 = vsub.s32 0, %v2506
    %v2508 = vrot.slane %v2503, %v2507
    %v2542 = vunpack.c.l.b16 %v2471
    %v2543 = vunpack.c.l.b16 %v2472
    %v2544 = vunpack.c.l.b16 %v2473
    %v2545 = vunpack.c.l.b16 %v2474
    %v2546 = vunpack.c.l.b16 %v2475
    %v2547 = vunpack.c.l.b16 %v2476
    %v2548 = vunpack.c.l.b16 %v2477
    %v2549 = vunpack.c.l.b16 %v2478
    %v2550 = vunpack.c.l.b16 %v2479
    %v2551 = vunpack.c.l.b16 %v2480
    %v2552 = vunpack.c.l.b16 %v2481
    %v2553 = vunpack.c.l.b16 %v2482
    %v2554 = vunpack.c.l.b16 %v2483
    %v2555 = vunpack.c.l.b16 %v2484
    %v2556 = vunpack.c.l.b16 %v2485
    %v2557 = vunpack.c.l.b16 %v2486
    %v2558 = vunpack.c.l.b16 %v2487
    %v2559 = vunpack.c.l.b16 %v2488
    %v2560 = vunpack.c.l.b16 %v2489
    %v2561 = vunpack.c.l.b16 %v2490
    %v2562 = vunpack.c.l.b16 %v2491
    %v2563 = vunpack.c.l.b16 %v2492
    %v2564 = vunpack.c.l.b16 %v2493
    %v2565 = vunpack.c.l.b16 %v2494
    %v2566 = vunpack.c.l.b16 %v2495
    %v2567 = vunpack.c.l.b16 %v2496
    %v2568 = vunpack.c.l.b16 %v2497
    %v2569 = vunpack.c.l.b16 %v2498
    %v2570 = vunpack.c.l.b16 %v2499
    %v2571 = vunpack.c.l.b16 %v2500
    %v2572 = vunpack.c.l.b16 %v2501
    %v2573 = vunpack.c.l.b16 %v2502
    %v2574 = vpack.c.b16 %v2543, %v2542
    %v2575 = vpack.c.b16 %v2545, %v2544
    %v2576 = vpack.c.b16 %v2547, %v2546
    %v2577 = vpack.c.b16 %v2549, %v2548
    %v2578 = vpack.c.b16 %v2551, %v2550
    %v2579 = vpack.c.b16 %v2553, %v2552
    %v2580 = vpack.c.b16 %v2555, %v2554
    %v2581 = vpack.c.b16 %v2557, %v2556
    %v2582 = vpack.c.b16 %v2559, %v2558
    %v2583 = vpack.c.b16 %v2561, %v2560
    %v2584 = vpack.c.b16 %v2563, %v2562
    %v2585 = vpack.c.b16 %v2565, %v2564
    %v2586 = vpack.c.b16 %v2567, %v2566
    %v2587 = vpack.c.b16 %v2569, %v2568
    %v2588 = vpack.c.b16 %v2571, %v2570
    %v2589 = vpack.c.b16 %v2573, %v2572
    %2606 = vmatprep.subr.bf16.mxu0 0
    %2607 = vmatpush1.bf16.msra.mxu0 %v2581
    %2608 = vmatprep.subr.bf16.mxu0 0
    %2609 = vmatpush1.bf16.msra.mxu0 %v2580
    %2610 = vmatprep.subr.bf16.mxu0 0
    %2611 = vmatpush1.bf16.msra.mxu0 %v2579
    %2612 = vmatprep.subr.bf16.mxu0 0
    %2613 = vmatpush1.bf16.msra.mxu0 %v2578
    %2614 = vmatprep.subr.bf16.mxu0 0
    %2615 = vmatpush1.bf16.msra.mxu0 %v2577
    %2616 = vmatprep.subr.bf16.mxu0 0
    %2617 = vmatpush1.bf16.msra.mxu0 %v2576
    %2618 = vmatprep.subr.bf16.mxu0 0
    %2619 = vmatpush1.bf16.msra.mxu0 %v2575
    %2620 = vmatprep.subr.bf16.mxu0 0
    %2621 = vmatpush1.bf16.msra.mxu0 %v2574
    %2622 = vmatprep.subr.bf16.mxu0 0
    %2623 = vmatpush2.bf16.msra.mxu0 %v2589
    %2624 = vmatprep.subr.bf16.mxu0 0
    %2625 = vmatpush2.bf16.msra.mxu0 %v2588
    %2626 = vmatprep.subr.bf16.mxu0 0
    %2627 = vmatpush2.bf16.msra.mxu0 %v2587
    %2628 = vmatprep.subr.bf16.mxu0 0
    %2629 = vmatpush2.bf16.msra.mxu0 %v2586
    %2630 = vmatprep.subr.bf16.mxu0 0
    %2631 = vmatpush2.bf16.msra.mxu0 %v2585
    %2632 = vmatprep.subr.bf16.mxu0 0
    %2633 = vmatpush2.bf16.msra.mxu0 %v2584
    %2634 = vmatprep.subr.bf16.mxu0 0
    %2635 = vmatpush2.bf16.msra.mxu0 %v2583
    %2636 = vmatprep.subr.bf16.mxu0 0
    %2637 = vmatpush2.bf16.msra.mxu0 %v2582
    %2638 = vmatprep.mubr.bf16.mxu0 %v2463
    %2639 = vmatmul.mubr.bf16.gmra.mxu0 %v2462
    %v2640 = vpop.f32.mrf.mxu0
    %v2641 = vadd.f32 %v2508, %v2640
    %v2642 = vpop.f32.mrf.mxu0
    %v2643 = vpop.f32.mrf.mxu0
    %v2644 = vpop.f32.mrf.mxu0
    %2645 = vdwg.mxu0
    %2646 = vst [vmem:[%s7] sm:$0xff] %v2641
    // Predicated region
    $region38: #{base_encoder_forward.1} parent=1 // pred_check
      _
    $region39: #{base_encoder_forward.1} parent=1 // pred_check_branch
      %2648 = sbr.rel (0) target = $region41
    $region40: #{base_encoder_forward.1} parent=1 // pred_region
      _
    $region41: #{base_encoder_forward.1} parent=1 // pred_fallthru
      _
    // Predicated region
    $region42: #{base_encoder_forward.1} parent=1 // pred_check
      _
    $region43: #{base_encoder_forward.1} parent=1 // pred_check_branch
      %2650 = sbr.rel (0) target = $region45
    $region44: #{base_encoder_forward.1} parent=1 // pred_region
      _
    $region45: #{base_encoder_forward.1} parent=1 // pred_fallthru
      _
    // Predicated region
    $region46: #{base_encoder_forward.1} parent=1 // pred_check
      _
    $region47: #{base_encoder_forward.1} parent=1 // pred_check_branch
      %2652 = sbr.rel (0) target = $region49
    $region48: #{base_encoder_forward.1} parent=1 // pred_region
      _
    $region49: #{base_encoder_forward.1} parent=1 // pred_fallthru
      _
    // Predicated region
    $region50: #{base_encoder_forward.1} parent=1 // pred_check
      _
    $region51: #{base_encoder_forward.1} parent=1 // pred_check_branch
      %2654 = sbr.rel (0) target = $region53
    $region52: #{base_encoder_forward.1} parent=1 // pred_region
      _
    $region53: #{base_encoder_forward.1} parent=1 // pred_fallthru
      _
    // Predicated region
    $region54: #{base_encoder_forward.1} parent=1 // pred_check
      _
    $region55: #{base_encoder_forward.1} parent=1 // pred_check_branch
      %2656 = sbr.rel (0) target = $region57
    $region56: #{base_encoder_forward.1} parent=1 // pred_region
      _
    $region57: #{base_encoder_forward.1} parent=1 // pred_fallthru
      _
    // Predicated region
    $region58: #{base_encoder_forward.1} parent=1 // pred_check
      _
    $region59: #{base_encoder_forward.1} parent=1 // pred_check_branch
      %2658 = sbr.rel (0) target = $region61
    $region60: #{base_encoder_forward.1} parent=1 // pred_region
      _
    $region61: #{base_encoder_forward.1} parent=1 // pred_fallthru
      _
    %2659 = vsyncpa [#allocation3], 1
    %2660 = vsyncpa [#allocation5], 1

</llo_original>
